<compile_context>
chip_gen: v6e
topology: v6e:2x2x1
jax: 0.10.0
libtpu: 0.0.40
codegen_flags: <defaults>
</compile_context>

<pallas_src>
import functools

import jax
import jax.numpy as jnp
from jax.experimental import pallas as pl
from jax.experimental.pallas import tpu as pltpu

G = 14                  # spatial positions per inner grid step (one conv-output row)
NPOS = 14 * 14          # conv output spatial positions
KPAD = 32               # 5*5 = 25 patch values, zero-padded to 32
CIN_COLS = G * KPAD     # 448  = per-step patch width
HID_COLS = G * 64       # 896  = per-step hidden width (14 positions x 64 channels)
NOUT_PAD = 128          # FC output 10, padded lane-dense to 128


# ------------------------------ Pallas kernel -------------------------------

def _fused_kernel(patch_ref, wbd_ref, bc_ref, wf_ref, bf_ref, o_ref):
    """One batch tile x one group of 14 conv-output positions.

    patch_ref: (1, TB, 448) bf16   patches of this group (14 positions x 32)
    wbd_ref  : (448, 896)   bf16   block-diagonal conv weight (14 copies of 32x64)
    bc_ref   : (1, 896)     f32    conv bias tiled 14x
    wf_ref   : (896, 128)   bf16   FC-weight rows for this group (lane-dense)
    bf_ref   : (1, 128)     f32    FC bias (padded)
    o_ref    : (TB, 128)    f32    resident accumulator across the inner grid axis
    """
    g = pl.program_id(1)

    @pl.when(g == 0)
    def _init():
        o_ref[...] = jnp.broadcast_to(bf_ref[...], o_ref.shape)

    x = patch_ref[0]                                                   # (TB, 448)
    h = jnp.dot(x, wbd_ref[...], preferred_element_type=jnp.float32)   # (TB, 896)
    h = jnp.maximum(h + bc_ref[...], 0.0)                              # bias + ReLU
    o_ref[...] += jnp.dot(h.astype(jnp.bfloat16), wf_ref[...],
                          preferred_element_type=jnp.float32)          # (TB, 128)


# ------------------------------- JAX glue ------------------------------------

def _round_up(n, m):
    return (n + m - 1) // m * m


def prepare_params(params):
    """One-time preprocessing of PyTorch-layout params into kernel-ready layouts."""
    conv_w = params["conv_w"]          # (64, 1, 5, 5) OIHW
    conv_b = params["conv_b"]          # (64,)
    fc_w = params["fc_w"]              # (10, 12544), input index = c*196 + p
    fc_b = params["fc_b"]              # (10,)

    wc = conv_w.reshape(64, 25).T                          # (25, 64), row = kh*5+kw
    wc = jnp.pad(wc, ((0, KPAD - 25), (0, 0)))             # (32, 64)
    wbd = jnp.kron(jnp.eye(G, dtype=wc.dtype), wc)         # (448, 896) block diagonal

    # FC weight permuted to our (p*64 + c) flatten order, N padded 10 -> 128.
    wf = fc_w.reshape(10, 64, NPOS).transpose(2, 1, 0)     # (196, 64, 10)
    wf = wf.reshape(NPOS * 64, 10)                         # (12544, 10)
    wf = jnp.pad(wf, ((0, 0), (0, NOUT_PAD - 10)))         # (12544, 128)

    return {
        "wbd": wbd.astype(jnp.bfloat16),                                     # (448, 896)
        "bc": jnp.tile(conv_b, G).reshape(1, HID_COLS).astype(jnp.float32),  # (1, 896)
        "wf": wf.astype(jnp.bfloat16),                                       # (12544, 128)
        "bf": jnp.pad(fc_b, (0, NOUT_PAD - 10)).reshape(1, NOUT_PAD)
                 .astype(jnp.float32),                                       # (1, 128)
    }


def _patch_groups(x):
    """x: (B,1,28,28) -> (14, B, 448) bf16. Group g = conv-output row i=g; within a
    group the 448 columns are ordered j*32 + (kh*5 + kw)."""
    B = x.shape[0]
    xp = jnp.pad(x, ((0, 0), (0, 0), (2, 2), (2, 2)))      # (B, 1, 32, 32)
    cols = []
    for di in range(5):
        for dj in range(5):
            cols.append(xp[:, 0, di:di + 28:2, dj:dj + 28:2])  # (B, 14, 14)
    p = jnp.stack(cols, axis=-1)                            # (B, 14, 14, 25)
    p = jnp.pad(p, ((0, 0), (0, 0), (0, 0), (0, KPAD - 25)))  # (B, 14, 14, 32)
    p = p.reshape(B, G, CIN_COLS).transpose(1, 0, 2)        # (14, B, 448)
    return p.astype(jnp.bfloat16)


@functools.partial(jax.jit, static_argnames=("tb",))
def mnist_hidden_net2_forward(x, kparams, tb=256):
    """Fused Pallas forward. x: (B, 1, 28, 28) f32 -> (B, 10) f32."""
    B = x.shape[0]
    TB = min(tb, _round_up(B, 8))       # batch tile (rows), multiple of 8
    Bp = _round_up(B, TB)

    patches = _patch_groups(x)                              # (14, B, 448) bf16
    if Bp != B:
        patches = jnp.pad(patches, ((0, 0), (0, Bp - B), (0, 0)))

    out = pl.pallas_call(
        _fused_kernel,
        out_shape=jax.ShapeDtypeStruct((Bp, NOUT_PAD), jnp.float32),
        grid=(Bp // TB, NPOS // G),
        in_specs=[
            pl.BlockSpec((1, TB, CIN_COLS), lambda bi, g: (g, bi, 0)),   # patches
            pl.BlockSpec((CIN_COLS, HID_COLS), lambda bi, g: (0, 0)),    # block-diag conv w
            pl.BlockSpec((1, HID_COLS), lambda bi, g: (0, 0)),           # conv bias
            pl.BlockSpec((HID_COLS, NOUT_PAD), lambda bi, g: (g, 0)),    # FC weight slice
            pl.BlockSpec((1, NOUT_PAD), lambda bi, g: (0, 0)),           # FC bias
        ],
        out_specs=pl.BlockSpec((TB, NOUT_PAD), lambda bi, g: (bi, 0)),
        compiler_params=pltpu.CompilerParams(
            dimension_semantics=("parallel", "arbitrary")),
    )(patches, kparams["wbd"], kparams["bc"], kparams["wf"], kparams["bf"])

    return out[:B, :10]


# ------------------------------ reference & test -----------------------------

def reference_forward(x, params):
    """Pure-JAX f32 reference matching the PyTorch forward semantics."""
    y = jax.lax.conv_general_dilated(
        x, params["conv_w"], window_strides=(2, 2),
        padding=((2, 2), (2, 2)),
        dimension_numbers=("NCHW", "OIHW", "NCHW"))
    y = jnp.maximum(y + params["conv_b"][None, :, None, None], 0.0)
    y = y.reshape(x.shape[0], -1)                           # channel-major flatten
    return y @ params["fc_w"].T + params["fc_b"]


def init_params(key):
    k1, k2, k3, k4 = jax.random.split(key, 4)
    return {
        "conv_w": 0.05 * jax.random.normal(k1, (64, 1, 5, 5), jnp.float32),
        "conv_b": 0.05 * jax.random.normal(k2, (64,), jnp.float32),
        "fc_w": 0.01 * jax.random.normal(k3, (10, 14 * 14 * 64), jnp.float32),
        "fc_b": 0.01 * jax.random.normal(k4, (10,), jnp.float32),
    }


if __name__ == "__main__":
    key = jax.random.PRNGKey(0)
    kx, kp = jax.random.split(key)
    params = init_params(kp)
    kparams = prepare_params(params)    # one-time weight preprocessing (hoisted)

    # MNIST-sized input (the 14*14*64 FC layer fixes spatial size to 28x28).
    x = jax.random.normal(kx, (2, 1, 28, 28), jnp.float32)

    out = mnist_hidden_net2_forward(x, kparams)
    out = jax.block_until_ready(out)

    ref = reference_forward(x, params)
    assert out.shape == (2, 10)
    max_err = float(jnp.max(jnp.abs(out - ref)))
    # bf16 operands with f32 accumulation -> relaxed tolerance vs f32 reference.
    assert jnp.allclose(out, ref, atol=2e-2, rtol=2e-2), f"mismatch vs ref: {max_err}"
    print("KERNEL_OK")
</pallas_src>

<mosaic_0001>
module attributes {stable_mosaic.version = 11 : i64} {
  func.func @_fused_kernel(%arg0: i32, %arg1: i32, %arg2: memref<1x8x448xbf16, #tpu.memory_space<vmem>>, %arg3: memref<448x896xbf16, #tpu.memory_space<vmem>>, %arg4: memref<1x896xf32, #tpu.memory_space<vmem>>, %arg5: memref<896x128xbf16, #tpu.memory_space<vmem>>, %arg6: memref<1x128xf32, #tpu.memory_space<vmem>>, %arg7: memref<8x128xf32, #tpu.memory_space<vmem>>) attributes {dimension_semantics = [#tpu.dimension_semantics<parallel>, #tpu.dimension_semantics<arbitrary>], iteration_bounds = array<i64: 1, 14>, scalar_prefetch = 0 : i64, scratch_operands = 0 : i64, tpu.core_type = #tpu.core_type<tc>, window_params = [{transform_indices = @transform_0, window_bounds = array<i64: 1, 8, 448>}, {pipeline_mode = #tpu.pipeline_mode<synchronous>, transform_indices = @transform_1, window_bounds = array<i64: 448, 896>}, {pipeline_mode = #tpu.pipeline_mode<synchronous>, transform_indices = @transform_2, window_bounds = array<i64: 1, 896>}, {transform_indices = @transform_3, window_bounds = array<i64: 896, 128>}, {pipeline_mode = #tpu.pipeline_mode<synchronous>, transform_indices = @transform_4, window_bounds = array<i64: 1, 128>}, {transform_indices = @transform_5, window_bounds = array<i64: 8, 128>}]} {
    %c0_i32 = arith.constant 0 : i32
    %0 = arith.cmpi eq, %arg1, %c0_i32 : i32
    %1 = arith.extui %0 : i1 to i32
    %c0_i32_0 = arith.constant 0 : i32
    %2 = arith.cmpi ne, %1, %c0_i32_0 : i32
    scf.if %2 {
      %c0_15 = arith.constant 0 : index
      %c0_16 = arith.constant 0 : index
      %18 = vector.load %arg6[%c0_15, %c0_16] : memref<1x128xf32, #tpu.memory_space<vmem>>, vector<1x128xf32>
      %19 = vector.shape_cast %18 : vector<1x128xf32> to vector<1x128xf32>
      %20 = vector.broadcast %19 : vector<1x128xf32> to vector<8x128xf32>
      %c0_17 = arith.constant 0 : index
      %c0_18 = arith.constant 0 : index
      %21 = vector.load %arg7[%c0_17, %c0_18] : memref<8x128xf32, #tpu.memory_space<vmem>>, vector<8x128xf32>
      tpu.vector_store %arg7[%c0_17, %c0_18], %20 {strides = array<i32>} : memref<8x128xf32, #tpu.memory_space<vmem>>, vector<8x128xf32>,
    } else {
    }
    %c0 = arith.constant 0 : index
    %c0_1 = arith.constant 0 : index
    %c0_2 = arith.constant 0 : index
    %3 = vector.load %arg2[%c0, %c0_1, %c0_2] : memref<1x8x448xbf16, #tpu.memory_space<vmem>>, vector<1x8x448xbf16>
    %4 = vector.shape_cast %3 : vector<1x8x448xbf16> to vector<8x448xbf16>
    %c0_3 = arith.constant 0 : index
    %c0_4 = arith.constant 0 : index
    %5 = vector.load %arg3[%c0_3, %c0_4] : memref<448x896xbf16, #tpu.memory_space<vmem>>, vector<448x896xbf16>
    %cst = arith.constant dense<0.000000e+00> : vector<8x896xf32>
    %6 = tpu.matmul %4, %5, %cst {dimension_numbers = #tpu.dot_dimension_numbers<[1], [0], [0], [1], [0, 0, 1, 1], [], []>} : vector<8x448xbf16>, vector<448x896xbf16>, vector<8x896xf32> -> vector<8x896xf32>
    %c0_5 = arith.constant 0 : index
    %c0_6 = arith.constant 0 : index
    %7 = vector.load %arg4[%c0_5, %c0_6] : memref<1x896xf32, #tpu.memory_space<vmem>>, vector<1x896xf32>
    %8 = vector.broadcast %7 : vector<1x896xf32> to vector<8x896xf32>
    %9 = arith.addf %6, %8 : vector<8x896xf32>
    %cst_7 = arith.constant 0.000000e+00 : f32
    %10 = vector.broadcast %cst_7 : f32 to vector<8x896xf32>
    %11 = arith.maximumf %9, %10 : vector<8x896xf32>
    %c0_8 = arith.constant 0 : index
    %c0_9 = arith.constant 0 : index
    %12 = vector.load %arg7[%c0_8, %c0_9] : memref<8x128xf32, #tpu.memory_space<vmem>>, vector<8x128xf32>
    %13 = arith.truncf %11 : vector<8x896xf32> to vector<8x896xbf16>
    %c0_10 = arith.constant 0 : index
    %c0_11 = arith.constant 0 : index
    %14 = vector.load %arg5[%c0_10, %c0_11] : memref<896x128xbf16, #tpu.memory_space<vmem>>, vector<896x128xbf16>
    %cst_12 = arith.constant dense<0.000000e+00> : vector<8x128xf32>
    %15 = tpu.matmul %13, %14, %cst_12 {dimension_numbers = #tpu.dot_dimension_numbers<[1], [0], [0], [1], [0, 0, 1, 1], [], []>} : vector<8x896xbf16>, vector<896x128xbf16>, vector<8x128xf32> -> vector<8x128xf32>
    %16 = arith.addf %12, %15 : vector<8x128xf32>
    %c0_13 = arith.constant 0 : index
    %c0_14 = arith.constant 0 : index
    %17 = vector.load %arg7[%c0_13, %c0_14] : memref<8x128xf32, #tpu.memory_space<vmem>>, vector<8x128xf32>
    tpu.vector_store %arg7[%c0_13, %c0_14], %16 {strides = array<i32>} : memref<8x128xf32, #tpu.memory_space<vmem>>, vector<8x128xf32>,
    return
  }
  func.func @transform_0(%arg0: i32, %arg1: i32) -> (i32, i32, i32) {
    %c0_i32 = arith.constant 0 : i32
    %c0_i32_0 = arith.constant 0 : i32
    return %arg1, %arg0, %c0_i32 : i32, i32, i32
  }
  func.func @transform_1(%arg0: i32, %arg1: i32) -> (i32, i32) {
    %c0_i32 = arith.constant 0 : i32
    %c0_i32_0 = arith.constant 0 : i32
    %c0_i32_1 = arith.constant 0 : i32
    return %c0_i32, %c0_i32_0 : i32, i32
  }
  func.func @transform_2(%arg0: i32, %arg1: i32) -> (i32, i32) {
    %c0_i32 = arith.constant 0 : i32
    %c0_i32_0 = arith.constant 0 : i32
    %c0_i32_1 = arith.constant 0 : i32
    return %c0_i32, %c0_i32_0 : i32, i32
  }
  func.func @transform_3(%arg0: i32, %arg1: i32) -> (i32, i32) {
    %c0_i32 = arith.constant 0 : i32
    %c0_i32_0 = arith.constant 0 : i32
    return %arg1, %c0_i32 : i32, i32
  }
  func.func @transform_4(%arg0: i32, %arg1: i32) -> (i32, i32) {
    %c0_i32 = arith.constant 0 : i32
    %c0_i32_0 = arith.constant 0 : i32
    %c0_i32_1 = arith.constant 0 : i32
    return %c0_i32, %c0_i32_0 : i32, i32
  }
  func.func @transform_5(%arg0: i32, %arg1: i32) -> (i32, i32) {
    %c0_i32 = arith.constant 0 : i32
    %c0_i32_0 = arith.constant 0 : i32
    return %arg0, %c0_i32 : i32, i32
  }
}

</mosaic_0001>

<llo_original>
// kernel: mnist_hidden_net2_forward.1
$region0: #{mnist_hidden_net2_forward.1}
  #allocation0 [shape = 'u32[]', space=smem, size = 0x4, offset = 0x4, fixed_abs, tag = 'smem constant byte address 0x4 - core index']
  #allocation1 [shape = 'u32[144,128]{1,0:T(1,128)}', space=vmem, size = 0x12000, scoped, tag = 'internal scratch']
  %s0 = inlined_call_operand.vmem [shape: bf16[14,8,448], index: 0, kind: input, shape index: {}]
  %s1 = inlined_call_operand.hbm [shape: bf16[448,896], index: 1, kind: input, shape index: {}]
  %s2 = inlined_call_operand.hbm [shape: f32[1,896], index: 2, kind: input, shape index: {}]
  %s3 = inlined_call_operand.hbm [shape: bf16[12544,128], index: 3, kind: input, shape index: {}]
  %s4 = inlined_call_operand.hbm [shape: f32[1,128], index: 4, kind: input, shape index: {}]
  %s5 = inlined_call_operand.vmem [shape: f32[8,128], index: 5, kind: output, shape index: {}]
  %s6 = sld [smem:[#allocation0]]
  $region73: #{mnist_hidden_net2_forward.1} parent=0
    _
  %s8 = ssub.s32 1, %s6
  %s9 = scalar_select 0, %s8, %s6
  $region1: #{mnist_hidden_net2_forward.1} parent=0
    #allocation2 [shape = 'u8[802816]{0}', space=vmem, size = 0xc4000, scoped, tag = 'input window, operand 1, single buffered']
    #allocation3 [shape = 's32[2]{0}', space=sflag, size = 0x8, scoped, tag = 'scoped memory for mnist_hidden_net2_forward.1']
    #allocation4 [shape = 'u8[3584]{0}', space=vmem, size = 0x1000, scoped, tag = 'input window, operand 2, single buffered']
    #allocation5 [shape = 's32[1]{0}', space=sflag, size = 0x4, scoped, tag = 'scoped memory for mnist_hidden_net2_forward.1']
    #allocation6 [shape = 'u8[458752]{0}', space=vmem, size = 0x70000, scoped, tag = 'input window, operand 3']
    #allocation7 [shape = 'u8[512]{0}', space=vmem, size = 0x400, scoped, tag = 'input window, operand 4, single buffered']
    %10 = vsyncpa [#allocation3], 0
    %11 = vsyncpa [#allocation5], 0
    loop: start=0, step=1, limit=16
    $region2: #{mnist_hidden_net2_forward.1} parent=1 // loop_pre_header
      _
    $region3: #{mnist_hidden_net2_forward.1} parent=1 // loop_header
      %s13 = sphi 0, %s17
      %p14 = scmp.ge.s32.totalorder %s13, 16
      %s20 = sphi 0, %s32
      %s21 = sphi 0, %s28
      %s22 = sphi 0, %s20
      %s23 = sphi 0, %s21
      %s24 = sphi 0, %s22
      %s25 = sphi 0, %s23
      %s37 = sphi 0, %s39
      %s40 = sphi 0, %s37
      %s41 = sphi 0, %s40
      %s57 = sphi 0, %s41
      %s61 = sphi 0, %s61
      %s63 = sphi 0, %s61
      %s64 = sphi 0, %s63
      %s78 = sphi 0, %s64
      %s82 = sphi 0, %s82
      %s84 = sphi 0, %s82
      %s85 = sphi 0, %s84
      %s99 = sphi 0, %s85
      %s105 = sphi 0, %s107
      %s108 = sphi 0, %s105
      %s109 = sphi 0, %s108
      %s125 = sphi 0, %s109
      %s129 = sphi 0, %s129
      %s131 = sphi 0, %s129
      %s132 = sphi 0, %s131
      %s146 = sphi 0, %s132
      %s152 = sphi 0, %s154
      %s155 = sphi 0, %s152
      %s156 = sphi 0, %s155
      %s172 = sphi 0, %s156
    $region4: #{mnist_hidden_net2_forward.1} parent=1 // loop_header_branch
      %16 = sbr.rel (%p14) target = $region8
    $region5: #{mnist_hidden_net2_forward.1} parent=1 // loop_body
      %s18 = ssub.s32 %s13, 1
      %s19 = ssub.s32 %s13, 2
      %s26 = sadd.s32 1, %s21
      %p27 = scmp.ge.s32.totalorder %s26, 14
      %s28 = scalar_select %p27, 0, %s26
      %s29 = sadd.s32 1, %s20
      %s30 = scalar_select %p27, %s29, %s20
      %p31 = scmp.ge.s32.totalorder %s30, 1
      %s32 = scalar_select %p31, 0, %s30
      %s33 = ssub.s32 %s21, %s28
      %s34 = ssub.s32 %s20, %s32
      %s35 = sor.u32 %s33, %s34
      %p36 = scmp.eq.s32.totalorder %s35, 0
      %s38 = sadd.s32 %s37, 1
      %s39 = scalar_select %p36, %s37, %s38
      %p42 = pneg %p36
      %p43 = scmp.eq.s32.totalorder %s13, 13
      %p44 = por %p42, %p43
      %p45 = scmp.ne.s32.totalorder %s37, %s40
      %p46 = scmp.eq.s32.totalorder %s13, 0
      %p47 = por %p45, %p46
      %p48 = scmp.ne.s32.totalorder %s37, %s40
      %p49 = scmp.eq.s32.totalorder %s18, 13
      %p50 = por %p48, %p49
      %p51 = scmp.ne.s32.totalorder %s40, %s41
      %p52 = scmp.eq.s32.totalorder %s18, 0
      %p53 = por %p51, %p52
      %p54 = scmp.ne.s32.totalorder %s40, %s41
      %p55 = scmp.eq.s32.totalorder %s19, 13
      %p56 = por %p54, %p55
      %p58 = scmp.ne.s32.totalorder %s41, %s57
      %p59 = scmp.eq.s32.totalorder %s19, 0
      %p60 = por %p58, %p59
      %s62 = sadd.s32 %s61, 1
      %p65 = scmp.eq.s32.totalorder %s13, 13
      %p66 = scmp.ne.s32.totalorder %s61, %s63
      %p67 = scmp.eq.s32.totalorder %s13, 0
      %p68 = por %p66, %p67
      %p69 = scmp.ne.s32.totalorder %s61, %s63
      %p70 = scmp.eq.s32.totalorder %s18, 13
      %p71 = por %p69, %p70
      %p72 = scmp.ne.s32.totalorder %s63, %s64
      %p73 = scmp.eq.s32.totalorder %s18, 0
      %p74 = por %p72, %p73
      %p75 = scmp.ne.s32.totalorder %s63, %s64
      %p76 = scmp.eq.s32.totalorder %s19, 13
      %p77 = por %p75, %p76
      %p79 = scmp.ne.s32.totalorder %s64, %s78
      %p80 = scmp.eq.s32.totalorder %s19, 0
      %p81 = por %p79, %p80
      %s83 = sadd.s32 %s82, 1
      %p86 = scmp.eq.s32.totalorder %s13, 13
      %p87 = scmp.ne.s32.totalorder %s82, %s84
      %p88 = scmp.eq.s32.totalorder %s13, 0
      %p89 = por %p87, %p88
      %p90 = scmp.ne.s32.totalorder %s82, %s84
      %p91 = scmp.eq.s32.totalorder %s18, 13
      %p92 = por %p90, %p91
      %p93 = scmp.ne.s32.totalorder %s84, %s85
      %p94 = scmp.eq.s32.totalorder %s18, 0
      %p95 = por %p93, %p94
      %p96 = scmp.ne.s32.totalorder %s84, %s85
      %p97 = scmp.eq.s32.totalorder %s19, 13
      %p98 = por %p96, %p97
      %p100 = scmp.ne.s32.totalorder %s85, %s99
      %p101 = scmp.eq.s32.totalorder %s19, 0
      %p102 = por %p100, %p101
      %s103 = ssub.s32 %s21, %s28
      %p104 = scmp.eq.s32.totalorder %s103, 0
      %s106 = sadd.s32 %s105, 1
      %s107 = scalar_select %p104, %s105, %s106
      %p110 = pneg %p104
      %p111 = scmp.eq.s32.totalorder %s13, 13
      %p112 = por %p110, %p111
      %p113 = scmp.ne.s32.totalorder %s105, %s108
      %p114 = scmp.eq.s32.totalorder %s13, 0
      %p115 = por %p113, %p114
      %p116 = scmp.ne.s32.totalorder %s105, %s108
      %p117 = scmp.eq.s32.totalorder %s18, 13
      %p118 = por %p116, %p117
      %p119 = scmp.ne.s32.totalorder %s108, %s109
      %p120 = scmp.eq.s32.totalorder %s18, 0
      %p121 = por %p119, %p120
      %p122 = scmp.ne.s32.totalorder %s108, %s109
      %p123 = scmp.eq.s32.totalorder %s19, 13
      %p124 = por %p122, %p123
      %p126 = scmp.ne.s32.totalorder %s109, %s125
      %p127 = scmp.eq.s32.totalorder %s19, 0
      %p128 = por %p126, %p127
      %s130 = sadd.s32 %s129, 1
      %p133 = scmp.eq.s32.totalorder %s13, 13
      %p134 = scmp.ne.s32.totalorder %s129, %s131
      %p135 = scmp.eq.s32.totalorder %s13, 0
      %p136 = por %p134, %p135
      %p137 = scmp.ne.s32.totalorder %s129, %s131
      %p138 = scmp.eq.s32.totalorder %s18, 13
      %p139 = por %p137, %p138
      %p140 = scmp.ne.s32.totalorder %s131, %s132
      %p141 = scmp.eq.s32.totalorder %s18, 0
      %p142 = por %p140, %p141
      %p143 = scmp.ne.s32.totalorder %s131, %s132
      %p144 = scmp.eq.s32.totalorder %s19, 13
      %p145 = por %p143, %p144
      %p147 = scmp.ne.s32.totalorder %s132, %s146
      %p148 = scmp.eq.s32.totalorder %s19, 0
      %p149 = por %p147, %p148
      %s150 = ssub.s32 %s20, %s32
      %p151 = scmp.eq.s32.totalorder %s150, 0
      %s153 = sadd.s32 %s152, 1
      %s154 = scalar_select %p151, %s152, %s153
      %p157 = pneg %p151
      %p158 = scmp.eq.s32.totalorder %s13, 13
      %p159 = por %p157, %p158
      %p160 = scmp.ne.s32.totalorder %s152, %s155
      %p161 = scmp.eq.s32.totalorder %s13, 0
      %p162 = por %p160, %p161
      %p163 = scmp.ne.s32.totalorder %s152, %s155
      %p164 = scmp.eq.s32.totalorder %s18, 13
      %p165 = por %p163, %p164
      %p166 = scmp.ne.s32.totalorder %s155, %s156
      %p167 = scmp.eq.s32.totalorder %s18, 0
      %p168 = por %p166, %p167
      %p169 = scmp.ne.s32.totalorder %s155, %s156
      %p170 = scmp.eq.s32.totalorder %s19, 13
      %p171 = por %p169, %p170
      %p173 = scmp.ne.s32.totalorder %s156, %s172
      %p174 = scmp.eq.s32.totalorder %s19, 0
      %p175 = por %p173, %p174
      %p176 = scmp.le.s32.totalorder 1, %s13
      %p177 = scmp.lt.s32.totalorder %s13, 15
      %p178 = pnand %p176, %p177
      %p179 = pneg %p178
      // Predicated region
      $region9: #{mnist_hidden_net2_forward.1} parent=5 // pred_check
        _
      $region10: #{mnist_hidden_net2_forward.1} parent=5 // pred_check_branch
        %181 = sbr.rel (%p178) target = $region12
      $region11: #{mnist_hidden_net2_forward.1} parent=5 // pred_region
        %s182 = ssub.s32 %s13, 1
        // Predicated region
        $region13: #{mnist_hidden_net2_forward.1} parent=11 // pred_check
          %p183 = pneg %p74
        $region14: #{mnist_hidden_net2_forward.1} parent=11 // pred_check_branch
          %185 = sbr.rel (%p183) target = $region16
        $region15: #{mnist_hidden_net2_forward.1} parent=11 // pred_region
          %s187 = ssub.s32 25088, 25088
          %188 = vsyncadd [#allocation3], %s187
          %s189 = sshll.u32 [#allocation2], 4
          %s190 = int_to_ptr.vmem [resolvable:$true] %s189
          %195 = dma.hbm_to_vmem [thread:$0]  %s1, 25088, %s190, [#allocation3], 448, 448, 28
        $region16: #{mnist_hidden_net2_forward.1} parent=11 // pred_fallthru
          _
        // Predicated region
        $region17: #{mnist_hidden_net2_forward.1} parent=11 // pred_check
          %p196 = pneg %p95
        $region18: #{mnist_hidden_net2_forward.1} parent=11 // pred_check_branch
          %198 = sbr.rel (%p196) target = $region20
        $region19: #{mnist_hidden_net2_forward.1} parent=11 // pred_region
          %s200 = ssub.s32 112, 112
          %201 = vsyncadd [#allocation5], %s200
          %s203 = sshll.u32 [#allocation4], 4
          %s204 = int_to_ptr.vmem [resolvable:$true] %s203
          %206 = dma.hbm_to_vmem [thread:$0]  %s2, 112, %s204, [#allocation5]
        $region20: #{mnist_hidden_net2_forward.1} parent=11 // pred_fallthru
          _
        // Predicated region
        $region21: #{mnist_hidden_net2_forward.1} parent=11 // pred_check
          %p207 = pneg %p142
        $region22: #{mnist_hidden_net2_forward.1} parent=11 // pred_check_branch
          %209 = sbr.rel (%p207) target = $region24
        $region23: #{mnist_hidden_net2_forward.1} parent=11 // pred_region
          %s211 = ssub.s32 16, 16
          %212 = vsyncadd [#allocation5], %s211
          %s214 = sshll.u32 [#allocation7], 4
          %s215 = int_to_ptr.vmem [resolvable:$true] %s214
          %217 = dma.hbm_to_vmem [thread:$0]  %s4, 16, %s215, [#allocation5]
        $region24: #{mnist_hidden_net2_forward.1} parent=11 // pred_fallthru
          _
      $region12: #{mnist_hidden_net2_forward.1} parent=5 // pred_fallthru
        _
      %p218 = scmp.lt.s32.totalorder %s13, 14
      // Predicated region
      $region25: #{mnist_hidden_net2_forward.1} parent=5 // pred_check
        %p219 = pneg %p218
      $region26: #{mnist_hidden_net2_forward.1} parent=5 // pred_check_branch
        %221 = sbr.rel (%p219) target = $region28
      $region27: #{mnist_hidden_net2_forward.1} parent=5 // pred_region
        // Predicated region
        $region29: #{mnist_hidden_net2_forward.1} parent=27 // pred_check
          %p222 = pneg %p47
        $region30: #{mnist_hidden_net2_forward.1} parent=27 // pred_check_branch
          %224 = sbr.rel (%p222) target = $region32
        $region31: #{mnist_hidden_net2_forward.1} parent=27 // pred_region
          %p225 = scmp.lt.s32.totalorder %s21, 13
          %s226 = scalar_select %p225, %s21, 13
          %p227 = scmp.lt.s32.totalorder %s20, 0
          %s228 = scalar_select %p227, %s20, 0
          %s229 = smul.addr %s228, 4
          %s230 = smul.addr %s226, 4
          %s231 = sadd.s32 %s229, %s230
          %s232 = smul.addr %s231, 4
          %s233 = scalar_lea.vmem %s0, %s232
        $region32: #{mnist_hidden_net2_forward.1} parent=27 // pred_fallthru
          _
        // Predicated region
        $region33: #{mnist_hidden_net2_forward.1} parent=27 // pred_check
          %p234 = pneg %p115
        $region34: #{mnist_hidden_net2_forward.1} parent=27 // pred_check_branch
          %236 = sbr.rel (%p234) target = $region36
        $region35: #{mnist_hidden_net2_forward.1} parent=27 // pred_region
          %s237 = sand.u32 %s13, 1
          %s238 = scalar_lea.sflag [#allocation3], %s237
          %s239 = sand.u32 %s105, 1
          %s240 = smul.addr %s239, 448
          %s241 = scalar_lea.vmem [#allocation6], %s240
          %s242 = smul.u32 112, %s21
          %s244 = ssub.s32 7168, 7168
          %245 = vsyncadd %s238, %s244
          %s246 = smul.addr %s242, 64
          %s247 = scalar_lea.hbm %s3, %s246
          %s248 = sshll.u32 %s241, 4
          %s249 = int_to_ptr.vmem [resolvable:$true] %s248
          %254 = dma.hbm_to_vmem [thread:$0]  %s247, 7168, %s249, %s238, 64, 64, 4
        $region36: #{mnist_hidden_net2_forward.1} parent=27 // pred_fallthru
          _
      $region28: #{mnist_hidden_net2_forward.1} parent=5 // pred_fallthru
        _
      %p255 = scmp.le.s32.totalorder 1, %s13
      %p256 = scmp.lt.s32.totalorder %s13, 15
      %p257 = pnand %p255, %p256
      %p258 = pneg %p257
      // Predicated region
      $region37: #{mnist_hidden_net2_forward.1} parent=5 // pred_check
        _
      $region38: #{mnist_hidden_net2_forward.1} parent=5 // pred_check_branch
        %260 = sbr.rel (%p257) target = $region40
      $region39: #{mnist_hidden_net2_forward.1} parent=5 // pred_region
        %s261 = ssub.s32 %s13, 1
        // Predicated region
        $region41: #{mnist_hidden_net2_forward.1} parent=39 // pred_check
          %p262 = pneg %p74
        $region42: #{mnist_hidden_net2_forward.1} parent=39 // pred_check_branch
          %264 = sbr.rel (%p262) target = $region44
        $region43: #{mnist_hidden_net2_forward.1} parent=39 // pred_region
          %265 = dma.done [#allocation3], 25088
        $region44: #{mnist_hidden_net2_forward.1} parent=39 // pred_fallthru
          _
        // Predicated region
        $region45: #{mnist_hidden_net2_forward.1} parent=39 // pred_check
          %p266 = pneg %p95
        $region46: #{mnist_hidden_net2_forward.1} parent=39 // pred_check_branch
          %268 = sbr.rel (%p266) target = $region48
        $region47: #{mnist_hidden_net2_forward.1} parent=39 // pred_region
          %269 = dma.done [#allocation5], 112
        $region48: #{mnist_hidden_net2_forward.1} parent=39 // pred_fallthru
          _
        %s270 = sand.u32 %s18, 1
        %s271 = scalar_lea.sflag [#allocation3], %s270
        %s272 = sand.u32 %s108, 1
        %s273 = smul.addr %s272, 448
        %s274 = scalar_lea.vmem [#allocation6], %s273
        // Predicated region
        $region49: #{mnist_hidden_net2_forward.1} parent=39 // pred_check
          %p275 = pneg %p121
        $region50: #{mnist_hidden_net2_forward.1} parent=39 // pred_check_branch
          %277 = sbr.rel (%p275) target = $region52
        $region51: #{mnist_hidden_net2_forward.1} parent=39 // pred_region
          %278 = dma.done %s271, 7168
        $region52: #{mnist_hidden_net2_forward.1} parent=39 // pred_fallthru
          _
        // Predicated region
        $region53: #{mnist_hidden_net2_forward.1} parent=39 // pred_check
          %p279 = pneg %p142
        $region54: #{mnist_hidden_net2_forward.1} parent=39 // pred_check_branch
          %281 = sbr.rel (%p279) target = $region56
        $region55: #{mnist_hidden_net2_forward.1} parent=39 // pred_region
          %282 = dma.done [#allocation5], 16
        $region56: #{mnist_hidden_net2_forward.1} parent=39 // pred_fallthru
          _
        %p283 = scmp.lt.s32.totalorder %s23, 13
        %s284 = scalar_select %p283, %s23, 13
        %p285 = scmp.lt.s32.totalorder %s22, 0
        %s286 = scalar_select %p285, %s22, 0
        %s287 = smul.addr %s286, 4
        %s288 = smul.addr %s284, 4
        %s289 = sadd.s32 %s287, %s288
        %s290 = smul.addr %s289, 4
        %s291 = scalar_lea.vmem %s0, %s290
        %p292 = pneg %p53
        %p293 = pneg %p50
        %p294 = pneg %p74
        %p295 = pneg %p71
        %p296 = pneg %p95
        %p297 = pneg %p92
        %s298 = sand.u32 %s18, 1
        %s299 = scalar_lea.sflag [#allocation3], %s298
        %s300 = sand.u32 %s108, 1
        %s301 = smul.addr %s300, 448
        %s302 = scalar_lea.vmem [#allocation6], %s301
        %p303 = pneg %p121
        %p304 = pneg %p118
        %p305 = pneg %p142
        %p306 = pneg %p139
        %p307 = pneg %p168
        %p308 = pneg %p165
        %p309 = scmp.lt.s32.totalorder %s22, 0
        %s310 = scalar_select %p309, %s22, 0
        %s311 = smul.addr %s310, 8
        %s312 = scalar_lea.vmem %s5, %s311
        %p313 = scmp.lt.s32.totalorder %s23, 13
        %s314 = scalar_select %p313, %s23, 13
        %p315 = scmp.lt.s32.totalorder %s22, 0
        %s316 = scalar_select %p315, %s22, 0
        %s317 = smul.addr %s316, 4
        %s318 = smul.addr %s314, 4
        %s319 = sadd.s32 %s317, %s318
        %s320 = smul.addr %s319, 4
        %s321 = scalar_lea.vmem %s0, %s320
        %s322 = smul.u32 112, %s23
        %p323 = scmp.lt.s32.totalorder %s22, 0
        %s324 = scalar_select %p323, %s22, 0
        %s325 = smul.addr %s324, 8
        %s326 = scalar_lea.vmem %s5, %s325
        %p328 = scmp.eq.s32.totalorder %s23, 0
        // Predicated region
        $region57: #{mnist_hidden_net2_forward.1} parent=39 // pred_check
          %p329 = pneg %p328
        $region58: #{mnist_hidden_net2_forward.1} parent=39 // pred_check_branch
          %331 = sbr.rel (%p329) target = $region60
        $region59: #{mnist_hidden_net2_forward.1} parent=39 // pred_region
          %v332 = vld [vmem:[#allocation7] sm:$0x1]
          %v334 = vlaneseq
          %v335 = vshrl.u32 %v334, 7
          %v336 = vsub.s32 0, %v335
          %v337 = vrot.slane %v332, %v336
          %339 = vst [vmem:[%s326] sm:$0xff] %v337
        $region60: #{mnist_hidden_net2_forward.1} parent=39 // pred_fallthru
          _
        %v340 = vld [vmem:[%s321] sm:$0xff]
        %v341 = vld [vmem:[%s321 + $0x8] sm:$0xff]
        %v342 = vld [vmem:[#allocation2] sm:$0xff]
        %v343 = vld [vmem:[#allocation2 + $0x8] sm:$0xff]
        %v344 = vld [vmem:[#allocation2 + $0x10] sm:$0xff]
        %v345 = vld [vmem:[#allocation2 + $0x18] sm:$0xf]
        %v346 = vld [vmem:[#allocation2 + $0x1c] sm:$0xff]
        %v347 = vld [vmem:[#allocation2 + $0x24] sm:$0xff]
        %v348 = vld [vmem:[#allocation2 + $0x2c] sm:$0xff]
        %v349 = vld [vmem:[#allocation2 + $0x34] sm:$0xf]
        %v350 = vld [vmem:[#allocation2 + $0x38] sm:$0xff]
        %v351 = vld [vmem:[#allocation2 + $0x40] sm:$0xff]
        %v352 = vld [vmem:[#allocation2 + $0x48] sm:$0xff]
        %v353 = vld [vmem:[#allocation2 + $0x50] sm:$0xf]
        %v354 = vld [vmem:[#allocation2 + $0x54] sm:$0xff]
        %v355 = vld [vmem:[#allocation2 + $0x5c] sm:$0xff]
        %v356 = vld [vmem:[#allocation2 + $0x64] sm:$0xff]
        %v357 = vld [vmem:[#allocation2 + $0x6c] sm:$0xf]
        %v358 = vld [vmem:[#allocation2 + $0x70] sm:$0xff]
        %v359 = vld [vmem:[#allocation2 + $0x78] sm:$0xff]
        %v360 = vld [vmem:[#allocation2 + $0x80] sm:$0xff]
        %v361 = vld [vmem:[#allocation2 + $0x88] sm:$0xf]
        %v362 = vld [vmem:[#allocation2 + $0x8c] sm:$0xff]
        %v363 = vld [vmem:[#allocation2 + $0x94] sm:$0xff]
        %v364 = vld [vmem:[#allocation2 + $0x9c] sm:$0xff]
        %v365 = vld [vmem:[#allocation2 + $0xa4] sm:$0xf]
        %v366 = vld [vmem:[#allocation2 + $0xa8] sm:$0xff]
        %v367 = vld [vmem:[#allocation2 + $0xb0] sm:$0xff]
        %v368 = vld [vmem:[#allocation2 + $0xb8] sm:$0xff]
        %v369 = vld [vmem:[#allocation2 + $0xc0] sm:$0xf]
        %v370 = vld [vmem:[#allocation2 + $0xc4] sm:$0xff]
        %v371 = vld [vmem:[#allocation2 + $0xcc] sm:$0xff]
        %v372 = vld [vmem:[#allocation2 + $0xd4] sm:$0xff]
        %v373 = vld [vmem:[#allocation2 + $0xdc] sm:$0xf]
        %v374 = vld [vmem:[#allocation2 + $0xe0] sm:$0xff]
        %v375 = vld [vmem:[#allocation2 + $0xe8] sm:$0xff]
        %v376 = vld [vmem:[#allocation2 + $0xf0] sm:$0xff]
        %v377 = vld [vmem:[#allocation2 + $0xf8] sm:$0xf]
        %v378 = vld [vmem:[#allocation2 + $0xfc] sm:$0xff]
        %v379 = vld [vmem:[#allocation2 + $0x104] sm:$0xff]
        %v380 = vld [vmem:[#allocation2 + $0x10c] sm:$0xff]
        %v381 = vld [vmem:[#allocation2 + $0x114] sm:$0xf]
        %v382 = vld [vmem:[#allocation2 + $0x118] sm:$0xff]
        %v383 = vld [vmem:[#allocation2 + $0x120] sm:$0xff]
        %v384 = vld [vmem:[#allocation2 + $0x128] sm:$0xff]
        %v385 = vld [vmem:[#allocation2 + $0x130] sm:$0xf]
        %v386 = vld [vmem:[#allocation2 + $0x134] sm:$0xff]
        %v387 = vld [vmem:[#allocation2 + $0x13c] sm:$0xff]
        %v388 = vld [vmem:[#allocation2 + $0x144] sm:$0xff]
        %v389 = vld [vmem:[#allocation2 + $0x14c] sm:$0xf]
        %v390 = vld [vmem:[#allocation2 + $0x150] sm:$0xff]
        %v391 = vld [vmem:[#allocation2 + $0x158] sm:$0xff]
        %v392 = vld [vmem:[#allocation2 + $0x160] sm:$0xff]
        %v393 = vld [vmem:[#allocation2 + $0x168] sm:$0xf]
        %v394 = vld [vmem:[#allocation2 + $0x16c] sm:$0xff]
        %v395 = vld [vmem:[#allocation2 + $0x174] sm:$0xff]
        %v396 = vld [vmem:[#allocation2 + $0x17c] sm:$0xff]
        %v397 = vld [vmem:[#allocation2 + $0x184] sm:$0xf]
        %v398 = vld [vmem:[#allocation2 + $0x188] sm:$0xff]
        %v399 = vld [vmem:[#allocation2 + $0x190] sm:$0xff]
        %v400 = vld [vmem:[#allocation2 + $0x198] sm:$0xff]
        %v401 = vld [vmem:[#allocation2 + $0x1a0] sm:$0xf]
        %v402 = vld [vmem:[#allocation2 + $0x1a4] sm:$0xff]
        %v403 = vld [vmem:[#allocation2 + $0x1ac] sm:$0xff]
        %v404 = vld [vmem:[#allocation2 + $0x1b4] sm:$0xff]
        %v405 = vld [vmem:[#allocation2 + $0x1bc] sm:$0xf]
        %v406 = vld [vmem:[#allocation2 + $0x1c0] sm:$0xff]
        %v407 = vld [vmem:[#allocation2 + $0x1c8] sm:$0xff]
        %v408 = vld [vmem:[#allocation2 + $0x1d0] sm:$0xff]
        %v409 = vld [vmem:[#allocation2 + $0x1d8] sm:$0xf]
        %v410 = vld [vmem:[#allocation2 + $0x1dc] sm:$0xff]
        %v411 = vld [vmem:[#allocation2 + $0x1e4] sm:$0xff]
        %v412 = vld [vmem:[#allocation2 + $0x1ec] sm:$0xff]
        %v413 = vld [vmem:[#allocation2 + $0x1f4] sm:$0xf]
        %v414 = vld [vmem:[#allocation2 + $0x1f8] sm:$0xff]
        %v415 = vld [vmem:[#allocation2 + $0x200] sm:$0xff]
        %v416 = vld [vmem:[#allocation2 + $0x208] sm:$0xff]
        %v417 = vld [vmem:[#allocation2 + $0x210] sm:$0xf]
        %v418 = vld [vmem:[#allocation2 + $0x214] sm:$0xff]
        %v419 = vld [vmem:[#allocation2 + $0x21c] sm:$0xff]
        %v420 = vld [vmem:[#allocation2 + $0x224] sm:$0xff]
        %v421 = vld [vmem:[#allocation2 + $0x22c] sm:$0xf]
        %v422 = vld [vmem:[#allocation2 + $0x230] sm:$0xff]
        %v423 = vld [vmem:[#allocation2 + $0x238] sm:$0xff]
        %v424 = vld [vmem:[#allocation2 + $0x240] sm:$0xff]
        %v425 = vld [vmem:[#allocation2 + $0x248] sm:$0xf]
        %v426 = vld [vmem:[#allocation2 + $0x24c] sm:$0xff]
        %v427 = vld [vmem:[#allocation2 + $0x254] sm:$0xff]
        %v428 = vld [vmem:[#allocation2 + $0x25c] sm:$0xff]
        %v429 = vld [vmem:[#allocation2 + $0x264] sm:$0xf]
        %v430 = vld [vmem:[#allocation2 + $0x268] sm:$0xff]
        %v431 = vld [vmem:[#allocation2 + $0x270] sm:$0xff]
        %v432 = vld [vmem:[#allocation2 + $0x278] sm:$0xff]
        %v433 = vld [vmem:[#allocation2 + $0x280] sm:$0xf]
        %v434 = vld [vmem:[#allocation2 + $0x284] sm:$0xff]
        %v435 = vld [vmem:[#allocation2 + $0x28c] sm:$0xff]
        %v436 = vld [vmem:[#allocation2 + $0x294] sm:$0xff]
        %v437 = vld [vmem:[#allocation2 + $0x29c] sm:$0xf]
        %v438 = vld [vmem:[#allocation2 + $0x2a0] sm:$0xff]
        %v439 = vld [vmem:[#allocation2 + $0x2a8] sm:$0xff]
        %v440 = vld [vmem:[#allocation2 + $0x2b0] sm:$0xff]
        %v441 = vld [vmem:[#allocation2 + $0x2b8] sm:$0xf]
        %v442 = vld [vmem:[#allocation2 + $0x2bc] sm:$0xff]
        %v443 = vld [vmem:[#allocation2 + $0x2c4] sm:$0xff]
        %v444 = vld [vmem:[#allocation2 + $0x2cc] sm:$0xff]
        %v445 = vld [vmem:[#allocation2 + $0x2d4] sm:$0xf]
        %v446 = vld [vmem:[#allocation2 + $0x2d8] sm:$0xff]
        %v447 = vld [vmem:[#allocation2 + $0x2e0] sm:$0xff]
        %v448 = vld [vmem:[#allocation2 + $0x2e8] sm:$0xff]
        %v449 = vld [vmem:[#allocation2 + $0x2f0] sm:$0xf]
        %v450 = vld [vmem:[#allocation2 + $0x2f4] sm:$0xff]
        %v451 = vld [vmem:[#allocation2 + $0x2fc] sm:$0xff]
        %v452 = vld [vmem:[#allocation2 + $0x304] sm:$0xff]
        %v453 = vld [vmem:[#allocation2 + $0x30c] sm:$0xf]
        %v454 = vld [vmem:[#allocation2 + $0x310] sm:$0xff]
        %v455 = vld [vmem:[#allocation2 + $0x318] sm:$0xff]
        %v456 = vld [vmem:[#allocation2 + $0x320] sm:$0xff]
        %v457 = vld [vmem:[#allocation2 + $0x328] sm:$0xf]
        %v458 = vld [vmem:[#allocation2 + $0x32c] sm:$0xff]
        %v459 = vld [vmem:[#allocation2 + $0x334] sm:$0xff]
        %v460 = vld [vmem:[#allocation2 + $0x33c] sm:$0xff]
        %v461 = vld [vmem:[#allocation2 + $0x344] sm:$0xf]
        %v462 = vld [vmem:[#allocation2 + $0x348] sm:$0xff]
        %v463 = vld [vmem:[#allocation2 + $0x350] sm:$0xff]
        %v464 = vld [vmem:[#allocation2 + $0x358] sm:$0xff]
        %v465 = vld [vmem:[#allocation2 + $0x360] sm:$0xf]
        %v466 = vld [vmem:[#allocation2 + $0x364] sm:$0xff]
        %v467 = vld [vmem:[#allocation2 + $0x36c] sm:$0xff]
        %v468 = vld [vmem:[#allocation2 + $0x374] sm:$0xff]
        %v469 = vld [vmem:[#allocation2 + $0x37c] sm:$0xf]
        %v470 = vld [vmem:[#allocation2 + $0x380] sm:$0xff]
        %v471 = vld [vmem:[#allocation2 + $0x388] sm:$0xff]
        %v472 = vld [vmem:[#allocation2 + $0x390] sm:$0xff]
        %v473 = vld [vmem:[#allocation2 + $0x398] sm:$0xf]
        %v474 = vld [vmem:[#allocation2 + $0x39c] sm:$0xff]
        %v475 = vld [vmem:[#allocation2 + $0x3a4] sm:$0xff]
        %v476 = vld [vmem:[#allocation2 + $0x3ac] sm:$0xff]
        %v477 = vld [vmem:[#allocation2 + $0x3b4] sm:$0xf]
        %v478 = vld [vmem:[#allocation2 + $0x3b8] sm:$0xff]
        %v479 = vld [vmem:[#allocation2 + $0x3c0] sm:$0xff]
        %v480 = vld [vmem:[#allocation2 + $0x3c8] sm:$0xff]
        %v481 = vld [vmem:[#allocation2 + $0x3d0] sm:$0xf]
        %v482 = vld [vmem:[#allocation2 + $0x3d4] sm:$0xff]
        %v483 = vld [vmem:[#allocation2 + $0x3dc] sm:$0xff]
        %v484 = vld [vmem:[#allocation2 + $0x3e4] sm:$0xff]
        %v485 = vld [vmem:[#allocation2 + $0x3ec] sm:$0xf]
        %v486 = vld [vmem:[#allocation2 + $0x3f0] sm:$0xff]
        %v487 = vld [vmem:[#allocation2 + $0x3f8] sm:$0xff]
        %v488 = vld [vmem:[#allocation2 + $0x400] sm:$0xff]
        %v489 = vld [vmem:[#allocation2 + $0x408] sm:$0xf]
        %v490 = vld [vmem:[#allocation2 + $0x40c] sm:$0xff]
        %v491 = vld [vmem:[#allocation2 + $0x414] sm:$0xff]
        %v492 = vld [vmem:[#allocation2 + $0x41c] sm:$0xff]
        %v493 = vld [vmem:[#allocation2 + $0x424] sm:$0xf]
        %v494 = vld [vmem:[#allocation2 + $0x428] sm:$0xff]
        %v495 = vld [vmem:[#allocation2 + $0x430] sm:$0xff]
        %v496 = vld [vmem:[#allocation2 + $0x438] sm:$0xff]
        %v497 = vld [vmem:[#allocation2 + $0x440] sm:$0xf]
        %v498 = vld [vmem:[#allocation2 + $0x444] sm:$0xff]
        %v499 = vld [vmem:[#allocation2 + $0x44c] sm:$0xff]
        %v500 = vld [vmem:[#allocation2 + $0x454] sm:$0xff]
        %v501 = vld [vmem:[#allocation2 + $0x45c] sm:$0xf]
        %v502 = vld [vmem:[#allocation2 + $0x460] sm:$0xff]
        %v503 = vld [vmem:[#allocation2 + $0x468] sm:$0xff]
        %v504 = vld [vmem:[#allocation2 + $0x470] sm:$0xff]
        %v505 = vld [vmem:[#allocation2 + $0x478] sm:$0xf]
        %v506 = vld [vmem:[#allocation2 + $0x47c] sm:$0xff]
        %v507 = vld [vmem:[#allocation2 + $0x484] sm:$0xff]
        %v508 = vld [vmem:[#allocation2 + $0x48c] sm:$0xff]
        %v509 = vld [vmem:[#allocation2 + $0x494] sm:$0xf]
        %v510 = vld [vmem:[#allocation2 + $0x498] sm:$0xff]
        %v511 = vld [vmem:[#allocation2 + $0x4a0] sm:$0xff]
        %v512 = vld [vmem:[#allocation2 + $0x4a8] sm:$0xff]
        %v513 = vld [vmem:[#allocation2 + $0x4b0] sm:$0xf]
        %v514 = vld [vmem:[#allocation2 + $0x4b4] sm:$0xff]
        %v515 = vld [vmem:[#allocation2 + $0x4bc] sm:$0xff]
        %v516 = vld [vmem:[#allocation2 + $0x4c4] sm:$0xff]
        %v517 = vld [vmem:[#allocation2 + $0x4cc] sm:$0xf]
        %v518 = vld [vmem:[#allocation2 + $0x4d0] sm:$0xff]
        %v519 = vld [vmem:[#allocation2 + $0x4d8] sm:$0xff]
        %v520 = vld [vmem:[#allocation2 + $0x4e0] sm:$0xff]
        %v521 = vld [vmem:[#allocation2 + $0x4e8] sm:$0xf]
        %v522 = vld [vmem:[#allocation2 + $0x4ec] sm:$0xff]
        %v523 = vld [vmem:[#allocation2 + $0x4f4] sm:$0xff]
        %v524 = vld [vmem:[#allocation2 + $0x4fc] sm:$0xff]
        %v525 = vld [vmem:[#allocation2 + $0x504] sm:$0xf]
        %v526 = vld [vmem:[#allocation2 + $0x508] sm:$0xff]
        %v527 = vld [vmem:[#allocation2 + $0x510] sm:$0xff]
        %v528 = vld [vmem:[#allocation2 + $0x518] sm:$0xff]
        %v529 = vld [vmem:[#allocation2 + $0x520] sm:$0xf]
        %v530 = vld [vmem:[#allocation2 + $0x524] sm:$0xff]
        %v531 = vld [vmem:[#allocation2 + $0x52c] sm:$0xff]
        %v532 = vld [vmem:[#allocation2 + $0x534] sm:$0xff]
        %v533 = vld [vmem:[#allocation2 + $0x53c] sm:$0xf]
        %v534 = vld [vmem:[#allocation2 + $0x540] sm:$0xff]
        %v535 = vld [vmem:[#allocation2 + $0x548] sm:$0xff]
        %v536 = vld [vmem:[#allocation2 + $0x550] sm:$0xff]
        %v537 = vld [vmem:[#allocation2 + $0x558] sm:$0xf]
        %v538 = vld [vmem:[#allocation2 + $0x55c] sm:$0xff]
        %v539 = vld [vmem:[#allocation2 + $0x564] sm:$0xff]
        %v540 = vld [vmem:[#allocation2 + $0x56c] sm:$0xff]
        %v541 = vld [vmem:[#allocation2 + $0x574] sm:$0xf]
        %v542 = vld [vmem:[#allocation2 + $0x578] sm:$0xff]
        %v543 = vld [vmem:[#allocation2 + $0x580] sm:$0xff]
        %v544 = vld [vmem:[#allocation2 + $0x588] sm:$0xff]
        %v545 = vld [vmem:[#allocation2 + $0x590] sm:$0xf]
        %v546 = vld [vmem:[#allocation2 + $0x594] sm:$0xff]
        %v547 = vld [vmem:[#allocation2 + $0x59c] sm:$0xff]
        %v548 = vld [vmem:[#allocation2 + $0x5a4] sm:$0xff]
        %v549 = vld [vmem:[#allocation2 + $0x5ac] sm:$0xf]
        %v550 = vld [vmem:[#allocation2 + $0x5b0] sm:$0xff]
        %v551 = vld [vmem:[#allocation2 + $0x5b8] sm:$0xff]
        %v552 = vld [vmem:[#allocation2 + $0x5c0] sm:$0xff]
        %v553 = vld [vmem:[#allocation2 + $0x5c8] sm:$0xf]
        %v554 = vld [vmem:[#allocation2 + $0x5cc] sm:$0xff]
        %v555 = vld [vmem:[#allocation2 + $0x5d4] sm:$0xff]
        %v556 = vld [vmem:[#allocation2 + $0x5dc] sm:$0xff]
        %v557 = vld [vmem:[#allocation2 + $0x5e4] sm:$0xf]
        %v558 = vld [vmem:[#allocation2 + $0x5e8] sm:$0xff]
        %v559 = vld [vmem:[#allocation2 + $0x5f0] sm:$0xff]
        %v560 = vld [vmem:[#allocation2 + $0x5f8] sm:$0xff]
        %v561 = vld [vmem:[#allocation2 + $0x600] sm:$0xf]
        %v562 = vld [vmem:[#allocation2 + $0x604] sm:$0xff]
        %v563 = vld [vmem:[#allocation2 + $0x60c] sm:$0xff]
        %v564 = vld [vmem:[#allocation2 + $0x614] sm:$0xff]
        %v565 = vld [vmem:[#allocation2 + $0x61c] sm:$0xf]
        %v566 = vld [vmem:[#allocation4] sm:$0xff]
        %v568 = vlaneseq
        %v569 = vshrl.u32 %v568, 7
        %v570 = vsub.s32 0, %v569
        %v571 = vrot.slane %v566, %v570
        %v572 = vlaneseq
        %v573 = vshrl.u32 %v572, 7
        %v574 = vsub.s32 1, %v573
        %v575 = vrot.slane %v566, %v574
        %v576 = vlaneseq
        %v577 = vshrl.u32 %v576, 7
        %v578 = vsub.s32 2, %v577
        %v579 = vrot.slane %v566, %v578
        %v580 = vlaneseq
        %v581 = vshrl.u32 %v580, 7
        %v582 = vsub.s32 3, %v581
        %v583 = vrot.slane %v566, %v582
        %v584 = vlaneseq
        %v585 = vshrl.u32 %v584, 7
        %v586 = vsub.s32 4, %v585
        %v587 = vrot.slane %v566, %v586
        %v588 = vlaneseq
        %v589 = vshrl.u32 %v588, 7
        %v590 = vsub.s32 5, %v589
        %v591 = vrot.slane %v566, %v590
        %v592 = vlaneseq
        %v593 = vshrl.u32 %v592, 7
        %v594 = vsub.s32 6, %v593
        %v595 = vrot.slane %v566, %v594
        %v605 = vunpack.c.l.b16 %v340
        %v606 = vunpack.c.h.b16 %v340
        %v607 = vunpack.c.l.b16 %v341
        %v608 = vunpack.c.h.b16 %v341
        %v609 = vpack.c.b16 %v605, %v605
        %v610 = vpack.c.b16 %v606, %v606
        %v611 = vpack.c.b16 %v607, %v607
        %v612 = vpack.c.b16 %v608, %v608
        %v840 = vunpack.c.l.b16 %v342
        %v841 = vunpack.c.h.b16 %v342
        %v842 = vunpack.c.l.b16 %v343
        %v843 = vunpack.c.h.b16 %v343
        %v844 = vunpack.c.l.b16 %v344
        %v845 = vunpack.c.h.b16 %v344
        %v846 = vunpack.c.l.b16 %v345
        %v847 = vunpack.c.l.b16 %v346
        %v848 = vunpack.c.h.b16 %v346
        %v849 = vunpack.c.l.b16 %v347
        %v850 = vunpack.c.h.b16 %v347
        %v851 = vunpack.c.l.b16 %v348
        %v852 = vunpack.c.h.b16 %v348
        %v853 = vunpack.c.l.b16 %v349
        %v854 = vunpack.c.l.b16 %v350
        %v855 = vunpack.c.h.b16 %v350
        %v856 = vunpack.c.l.b16 %v351
        %v857 = vunpack.c.h.b16 %v351
        %v858 = vunpack.c.l.b16 %v352
        %v859 = vunpack.c.h.b16 %v352
        %v860 = vunpack.c.l.b16 %v353
        %v861 = vunpack.c.l.b16 %v354
        %v862 = vunpack.c.h.b16 %v354
        %v863 = vunpack.c.l.b16 %v355
        %v864 = vunpack.c.h.b16 %v355
        %v865 = vunpack.c.l.b16 %v356
        %v866 = vunpack.c.h.b16 %v356
        %v867 = vunpack.c.l.b16 %v357
        %v868 = vunpack.c.l.b16 %v358
        %v869 = vunpack.c.h.b16 %v358
        %v870 = vunpack.c.l.b16 %v359
        %v871 = vunpack.c.h.b16 %v359
        %v872 = vunpack.c.l.b16 %v360
        %v873 = vunpack.c.h.b16 %v360
        %v874 = vunpack.c.l.b16 %v361
        %v875 = vunpack.c.l.b16 %v362
        %v876 = vunpack.c.h.b16 %v362
        %v877 = vunpack.c.l.b16 %v363
        %v878 = vunpack.c.h.b16 %v363
        %v879 = vunpack.c.l.b16 %v364
        %v880 = vunpack.c.h.b16 %v364
        %v881 = vunpack.c.l.b16 %v365
        %v882 = vunpack.c.l.b16 %v366
        %v883 = vunpack.c.h.b16 %v366
        %v884 = vunpack.c.l.b16 %v367
        %v885 = vunpack.c.h.b16 %v367
        %v886 = vunpack.c.l.b16 %v368
        %v887 = vunpack.c.h.b16 %v368
        %v888 = vunpack.c.l.b16 %v369
        %v889 = vunpack.c.l.b16 %v370
        %v890 = vunpack.c.h.b16 %v370
        %v891 = vunpack.c.l.b16 %v371
        %v892 = vunpack.c.h.b16 %v371
        %v893 = vunpack.c.l.b16 %v372
        %v894 = vunpack.c.h.b16 %v372
        %v895 = vunpack.c.l.b16 %v373
        %v896 = vunpack.c.l.b16 %v374
        %v897 = vunpack.c.h.b16 %v374
        %v898 = vunpack.c.l.b16 %v375
        %v899 = vunpack.c.h.b16 %v375
        %v900 = vunpack.c.l.b16 %v376
        %v901 = vunpack.c.h.b16 %v376
        %v902 = vunpack.c.l.b16 %v377
        %v903 = vunpack.c.l.b16 %v378
        %v904 = vunpack.c.h.b16 %v378
        %v905 = vunpack.c.l.b16 %v379
        %v906 = vunpack.c.h.b16 %v379
        %v907 = vunpack.c.l.b16 %v380
        %v908 = vunpack.c.h.b16 %v380
        %v909 = vunpack.c.l.b16 %v381
        %v910 = vunpack.c.l.b16 %v382
        %v911 = vunpack.c.h.b16 %v382
        %v912 = vunpack.c.l.b16 %v383
        %v913 = vunpack.c.h.b16 %v383
        %v914 = vunpack.c.l.b16 %v384
        %v915 = vunpack.c.h.b16 %v384
        %v916 = vunpack.c.l.b16 %v385
        %v917 = vunpack.c.l.b16 %v386
        %v918 = vunpack.c.h.b16 %v386
        %v919 = vunpack.c.l.b16 %v387
        %v920 = vunpack.c.h.b16 %v387
        %v921 = vunpack.c.l.b16 %v388
        %v922 = vunpack.c.h.b16 %v388
        %v923 = vunpack.c.l.b16 %v389
        %v924 = vunpack.c.l.b16 %v390
        %v925 = vunpack.c.h.b16 %v390
        %v926 = vunpack.c.l.b16 %v391
        %v927 = vunpack.c.h.b16 %v391
        %v928 = vunpack.c.l.b16 %v392
        %v929 = vunpack.c.h.b16 %v392
        %v930 = vunpack.c.l.b16 %v393
        %v931 = vunpack.c.l.b16 %v394
        %v932 = vunpack.c.h.b16 %v394
        %v933 = vunpack.c.l.b16 %v395
        %v934 = vunpack.c.h.b16 %v395
        %v935 = vunpack.c.l.b16 %v396
        %v936 = vunpack.c.h.b16 %v396
        %v937 = vunpack.c.l.b16 %v397
        %v938 = vunpack.c.l.b16 %v398
        %v939 = vunpack.c.h.b16 %v398
        %v940 = vunpack.c.l.b16 %v399
        %v941 = vunpack.c.h.b16 %v399
        %v942 = vunpack.c.l.b16 %v400
        %v943 = vunpack.c.h.b16 %v400
        %v944 = vunpack.c.l.b16 %v401
        %v945 = vunpack.c.l.b16 %v402
        %v946 = vunpack.c.h.b16 %v402
        %v947 = vunpack.c.l.b16 %v403
        %v948 = vunpack.c.h.b16 %v403
        %v949 = vunpack.c.l.b16 %v404
        %v950 = vunpack.c.h.b16 %v404
        %v951 = vunpack.c.l.b16 %v405
        %v952 = vunpack.c.l.b16 %v406
        %v953 = vunpack.c.h.b16 %v406
        %v954 = vunpack.c.l.b16 %v407
        %v955 = vunpack.c.h.b16 %v407
        %v956 = vunpack.c.l.b16 %v408
        %v957 = vunpack.c.h.b16 %v408
        %v958 = vunpack.c.l.b16 %v409
        %v959 = vunpack.c.l.b16 %v410
        %v960 = vunpack.c.h.b16 %v410
        %v961 = vunpack.c.l.b16 %v411
        %v962 = vunpack.c.h.b16 %v411
        %v963 = vunpack.c.l.b16 %v412
        %v964 = vunpack.c.h.b16 %v412
        %v965 = vunpack.c.l.b16 %v413
        %v966 = vunpack.c.l.b16 %v414
        %v967 = vunpack.c.h.b16 %v414
        %v968 = vunpack.c.l.b16 %v415
        %v969 = vunpack.c.h.b16 %v415
        %v970 = vunpack.c.l.b16 %v416
        %v971 = vunpack.c.h.b16 %v416
        %v972 = vunpack.c.l.b16 %v417
        %v973 = vunpack.c.l.b16 %v418
        %v974 = vunpack.c.h.b16 %v418
        %v975 = vunpack.c.l.b16 %v419
        %v976 = vunpack.c.h.b16 %v419
        %v977 = vunpack.c.l.b16 %v420
        %v978 = vunpack.c.h.b16 %v420
        %v979 = vunpack.c.l.b16 %v421
        %v980 = vunpack.c.l.b16 %v422
        %v981 = vunpack.c.h.b16 %v422
        %v982 = vunpack.c.l.b16 %v423
        %v983 = vunpack.c.h.b16 %v423
        %v984 = vunpack.c.l.b16 %v424
        %v985 = vunpack.c.h.b16 %v424
        %v986 = vunpack.c.l.b16 %v425
        %v987 = vunpack.c.l.b16 %v426
        %v988 = vunpack.c.h.b16 %v426
        %v989 = vunpack.c.l.b16 %v427
        %v990 = vunpack.c.h.b16 %v427
        %v991 = vunpack.c.l.b16 %v428
        %v992 = vunpack.c.h.b16 %v428
        %v993 = vunpack.c.l.b16 %v429
        %v994 = vunpack.c.l.b16 %v430
        %v995 = vunpack.c.h.b16 %v430
        %v996 = vunpack.c.l.b16 %v431
        %v997 = vunpack.c.h.b16 %v431
        %v998 = vunpack.c.l.b16 %v432
        %v999 = vunpack.c.h.b16 %v432
        %v1000 = vunpack.c.l.b16 %v433
        %v1001 = vunpack.c.l.b16 %v434
        %v1002 = vunpack.c.h.b16 %v434
        %v1003 = vunpack.c.l.b16 %v435
        %v1004 = vunpack.c.h.b16 %v435
        %v1005 = vunpack.c.l.b16 %v436
        %v1006 = vunpack.c.h.b16 %v436
        %v1007 = vunpack.c.l.b16 %v437
        %v1008 = vunpack.c.l.b16 %v438
        %v1009 = vunpack.c.h.b16 %v438
        %v1010 = vunpack.c.l.b16 %v439
        %v1011 = vunpack.c.h.b16 %v439
        %v1012 = vunpack.c.l.b16 %v440
        %v1013 = vunpack.c.h.b16 %v440
        %v1014 = vunpack.c.l.b16 %v441
        %v1015 = vunpack.c.l.b16 %v442
        %v1016 = vunpack.c.h.b16 %v442
        %v1017 = vunpack.c.l.b16 %v443
        %v1018 = vunpack.c.h.b16 %v443
        %v1019 = vunpack.c.l.b16 %v444
        %v1020 = vunpack.c.h.b16 %v444
        %v1021 = vunpack.c.l.b16 %v445
        %v1022 = vunpack.c.l.b16 %v446
        %v1023 = vunpack.c.h.b16 %v446
        %v1024 = vunpack.c.l.b16 %v447
        %v1025 = vunpack.c.h.b16 %v447
        %v1026 = vunpack.c.l.b16 %v448
        %v1027 = vunpack.c.h.b16 %v448
        %v1028 = vunpack.c.l.b16 %v449
        %v1029 = vunpack.c.l.b16 %v450
        %v1030 = vunpack.c.h.b16 %v450
        %v1031 = vunpack.c.l.b16 %v451
        %v1032 = vunpack.c.h.b16 %v451
        %v1033 = vunpack.c.l.b16 %v452
        %v1034 = vunpack.c.h.b16 %v452
        %v1035 = vunpack.c.l.b16 %v453
        %v1036 = vunpack.c.l.b16 %v454
        %v1037 = vunpack.c.h.b16 %v454
        %v1038 = vunpack.c.l.b16 %v455
        %v1039 = vunpack.c.h.b16 %v455
        %v1040 = vunpack.c.l.b16 %v456
        %v1041 = vunpack.c.h.b16 %v456
        %v1042 = vunpack.c.l.b16 %v457
        %v1043 = vunpack.c.l.b16 %v458
        %v1044 = vunpack.c.h.b16 %v458
        %v1045 = vunpack.c.l.b16 %v459
        %v1046 = vunpack.c.h.b16 %v459
        %v1047 = vunpack.c.l.b16 %v460
        %v1048 = vunpack.c.h.b16 %v460
        %v1049 = vunpack.c.l.b16 %v461
        %v1050 = vunpack.c.l.b16 %v462
        %v1051 = vunpack.c.h.b16 %v462
        %v1052 = vunpack.c.l.b16 %v463
        %v1053 = vunpack.c.h.b16 %v463
        %v1054 = vunpack.c.l.b16 %v464
        %v1055 = vunpack.c.h.b16 %v464
        %v1056 = vunpack.c.l.b16 %v465
        %v1057 = vunpack.c.l.b16 %v466
        %v1058 = vunpack.c.h.b16 %v466
        %v1059 = vunpack.c.l.b16 %v467
        %v1060 = vunpack.c.h.b16 %v467
        %v1061 = vunpack.c.l.b16 %v468
        %v1062 = vunpack.c.h.b16 %v468
        %v1063 = vunpack.c.l.b16 %v469
        %v1064 = vunpack.c.l.b16 %v470
        %v1065 = vunpack.c.h.b16 %v470
        %v1066 = vunpack.c.l.b16 %v471
        %v1067 = vunpack.c.h.b16 %v471
        %v1068 = vunpack.c.l.b16 %v472
        %v1069 = vunpack.c.h.b16 %v472
        %v1070 = vunpack.c.l.b16 %v473
        %v1071 = vunpack.c.l.b16 %v474
        %v1072 = vunpack.c.h.b16 %v474
        %v1073 = vunpack.c.l.b16 %v475
        %v1074 = vunpack.c.h.b16 %v475
        %v1075 = vunpack.c.l.b16 %v476
        %v1076 = vunpack.c.h.b16 %v476
        %v1077 = vunpack.c.l.b16 %v477
        %v1078 = vunpack.c.l.b16 %v478
        %v1079 = vunpack.c.h.b16 %v478
        %v1080 = vunpack.c.l.b16 %v479
        %v1081 = vunpack.c.h.b16 %v479
        %v1082 = vunpack.c.l.b16 %v480
        %v1083 = vunpack.c.h.b16 %v480
        %v1084 = vunpack.c.l.b16 %v481
        %v1085 = vunpack.c.l.b16 %v482
        %v1086 = vunpack.c.h.b16 %v482
        %v1087 = vunpack.c.l.b16 %v483
        %v1088 = vunpack.c.h.b16 %v483
        %v1089 = vunpack.c.l.b16 %v484
        %v1090 = vunpack.c.h.b16 %v484
        %v1091 = vunpack.c.l.b16 %v485
        %v1092 = vunpack.c.l.b16 %v486
        %v1093 = vunpack.c.h.b16 %v486
        %v1094 = vunpack.c.l.b16 %v487
        %v1095 = vunpack.c.h.b16 %v487
        %v1096 = vunpack.c.l.b16 %v488
        %v1097 = vunpack.c.h.b16 %v488
        %v1098 = vunpack.c.l.b16 %v489
        %v1099 = vunpack.c.l.b16 %v490
        %v1100 = vunpack.c.h.b16 %v490
        %v1101 = vunpack.c.l.b16 %v491
        %v1102 = vunpack.c.h.b16 %v491
        %v1103 = vunpack.c.l.b16 %v492
        %v1104 = vunpack.c.h.b16 %v492
        %v1105 = vunpack.c.l.b16 %v493
        %v1106 = vunpack.c.l.b16 %v494
        %v1107 = vunpack.c.h.b16 %v494
        %v1108 = vunpack.c.l.b16 %v495
        %v1109 = vunpack.c.h.b16 %v495
        %v1110 = vunpack.c.l.b16 %v496
        %v1111 = vunpack.c.h.b16 %v496
        %v1112 = vunpack.c.l.b16 %v497
        %v1113 = vunpack.c.l.b16 %v498
        %v1114 = vunpack.c.h.b16 %v498
        %v1115 = vunpack.c.l.b16 %v499
        %v1116 = vunpack.c.h.b16 %v499
        %v1117 = vunpack.c.l.b16 %v500
        %v1118 = vunpack.c.h.b16 %v500
        %v1119 = vunpack.c.l.b16 %v501
        %v1120 = vunpack.c.l.b16 %v502
        %v1121 = vunpack.c.h.b16 %v502
        %v1122 = vunpack.c.l.b16 %v503
        %v1123 = vunpack.c.h.b16 %v503
        %v1124 = vunpack.c.l.b16 %v504
        %v1125 = vunpack.c.h.b16 %v504
        %v1126 = vunpack.c.l.b16 %v505
        %v1127 = vunpack.c.l.b16 %v506
        %v1128 = vunpack.c.h.b16 %v506
        %v1129 = vunpack.c.l.b16 %v507
        %v1130 = vunpack.c.h.b16 %v507
        %v1131 = vunpack.c.l.b16 %v508
        %v1132 = vunpack.c.h.b16 %v508
        %v1133 = vunpack.c.l.b16 %v509
        %v1134 = vunpack.c.l.b16 %v510
        %v1135 = vunpack.c.h.b16 %v510
        %v1136 = vunpack.c.l.b16 %v511
        %v1137 = vunpack.c.h.b16 %v511
        %v1138 = vunpack.c.l.b16 %v512
        %v1139 = vunpack.c.h.b16 %v512
        %v1140 = vunpack.c.l.b16 %v513
        %v1141 = vunpack.c.l.b16 %v514
        %v1142 = vunpack.c.h.b16 %v514
        %v1143 = vunpack.c.l.b16 %v515
        %v1144 = vunpack.c.h.b16 %v515
        %v1145 = vunpack.c.l.b16 %v516
        %v1146 = vunpack.c.h.b16 %v516
        %v1147 = vunpack.c.l.b16 %v517
        %v1148 = vunpack.c.l.b16 %v518
        %v1149 = vunpack.c.h.b16 %v518
        %v1150 = vunpack.c.l.b16 %v519
        %v1151 = vunpack.c.h.b16 %v519
        %v1152 = vunpack.c.l.b16 %v520
        %v1153 = vunpack.c.h.b16 %v520
        %v1154 = vunpack.c.l.b16 %v521
        %v1155 = vunpack.c.l.b16 %v522
        %v1156 = vunpack.c.h.b16 %v522
        %v1157 = vunpack.c.l.b16 %v523
        %v1158 = vunpack.c.h.b16 %v523
        %v1159 = vunpack.c.l.b16 %v524
        %v1160 = vunpack.c.h.b16 %v524
        %v1161 = vunpack.c.l.b16 %v525
        %v1162 = vunpack.c.l.b16 %v526
        %v1163 = vunpack.c.h.b16 %v526
        %v1164 = vunpack.c.l.b16 %v527
        %v1165 = vunpack.c.h.b16 %v527
        %v1166 = vunpack.c.l.b16 %v528
        %v1167 = vunpack.c.h.b16 %v528
        %v1168 = vunpack.c.l.b16 %v529
        %v1169 = vunpack.c.l.b16 %v530
        %v1170 = vunpack.c.h.b16 %v530
        %v1171 = vunpack.c.l.b16 %v531
        %v1172 = vunpack.c.h.b16 %v531
        %v1173 = vunpack.c.l.b16 %v532
        %v1174 = vunpack.c.h.b16 %v532
        %v1175 = vunpack.c.l.b16 %v533
        %v1176 = vunpack.c.l.b16 %v534
        %v1177 = vunpack.c.h.b16 %v534
        %v1178 = vunpack.c.l.b16 %v535
        %v1179 = vunpack.c.h.b16 %v535
        %v1180 = vunpack.c.l.b16 %v536
        %v1181 = vunpack.c.h.b16 %v536
        %v1182 = vunpack.c.l.b16 %v537
        %v1183 = vunpack.c.l.b16 %v538
        %v1184 = vunpack.c.h.b16 %v538
        %v1185 = vunpack.c.l.b16 %v539
        %v1186 = vunpack.c.h.b16 %v539
        %v1187 = vunpack.c.l.b16 %v540
        %v1188 = vunpack.c.h.b16 %v540
        %v1189 = vunpack.c.l.b16 %v541
        %v1190 = vunpack.c.l.b16 %v542
        %v1191 = vunpack.c.h.b16 %v542
        %v1192 = vunpack.c.l.b16 %v543
        %v1193 = vunpack.c.h.b16 %v543
        %v1194 = vunpack.c.l.b16 %v544
        %v1195 = vunpack.c.h.b16 %v544
        %v1196 = vunpack.c.l.b16 %v545
        %v1197 = vunpack.c.l.b16 %v546
        %v1198 = vunpack.c.h.b16 %v546
        %v1199 = vunpack.c.l.b16 %v547
        %v1200 = vunpack.c.h.b16 %v547
        %v1201 = vunpack.c.l.b16 %v548
        %v1202 = vunpack.c.h.b16 %v548
        %v1203 = vunpack.c.l.b16 %v549
        %v1204 = vunpack.c.l.b16 %v550
        %v1205 = vunpack.c.h.b16 %v550
        %v1206 = vunpack.c.l.b16 %v551
        %v1207 = vunpack.c.h.b16 %v551
        %v1208 = vunpack.c.l.b16 %v552
        %v1209 = vunpack.c.h.b16 %v552
        %v1210 = vunpack.c.l.b16 %v553
        %v1211 = vunpack.c.l.b16 %v554
        %v1212 = vunpack.c.h.b16 %v554
        %v1213 = vunpack.c.l.b16 %v555
        %v1214 = vunpack.c.h.b16 %v555
        %v1215 = vunpack.c.l.b16 %v556
        %v1216 = vunpack.c.h.b16 %v556
        %v1217 = vunpack.c.l.b16 %v557
        %v1218 = vunpack.c.l.b16 %v558
        %v1219 = vunpack.c.h.b16 %v558
        %v1220 = vunpack.c.l.b16 %v559
        %v1221 = vunpack.c.h.b16 %v559
        %v1222 = vunpack.c.l.b16 %v560
        %v1223 = vunpack.c.h.b16 %v560
        %v1224 = vunpack.c.l.b16 %v561
        %v1225 = vunpack.c.l.b16 %v562
        %v1226 = vunpack.c.h.b16 %v562
        %v1227 = vunpack.c.l.b16 %v563
        %v1228 = vunpack.c.h.b16 %v563
        %v1229 = vunpack.c.l.b16 %v564
        %v1230 = vunpack.c.h.b16 %v564
        %v1231 = vunpack.c.l.b16 %v565
        %v1232 = vpack.c.b16 %v847, %v840
        %v1233 = vpack.c.b16 %v848, %v841
        %v1234 = vpack.c.b16 %v849, %v842
        %v1235 = vpack.c.b16 %v850, %v843
        %v1236 = vpack.c.b16 %v851, %v844
        %v1237 = vpack.c.b16 %v852, %v845
        %v1238 = vpack.c.b16 %v853, %v846
        %v1239 = vpack.c.b16 %v861, %v854
        %v1240 = vpack.c.b16 %v862, %v855
        %v1241 = vpack.c.b16 %v863, %v856
        %v1242 = vpack.c.b16 %v864, %v857
        %v1243 = vpack.c.b16 %v865, %v858
        %v1244 = vpack.c.b16 %v866, %v859
        %v1245 = vpack.c.b16 %v867, %v860
        %v1246 = vpack.c.b16 %v875, %v868
        %v1247 = vpack.c.b16 %v876, %v869
        %v1248 = vpack.c.b16 %v877, %v870
        %v1249 = vpack.c.b16 %v878, %v871
        %v1250 = vpack.c.b16 %v879, %v872
        %v1251 = vpack.c.b16 %v880, %v873
        %v1252 = vpack.c.b16 %v881, %v874
        %v1253 = vpack.c.b16 %v889, %v882
        %v1254 = vpack.c.b16 %v890, %v883
        %v1255 = vpack.c.b16 %v891, %v884
        %v1256 = vpack.c.b16 %v892, %v885
        %v1257 = vpack.c.b16 %v893, %v886
        %v1258 = vpack.c.b16 %v894, %v887
        %v1259 = vpack.c.b16 %v895, %v888
        %v1260 = vpack.c.b16 %v903, %v896
        %v1261 = vpack.c.b16 %v904, %v897
        %v1262 = vpack.c.b16 %v905, %v898
        %v1263 = vpack.c.b16 %v906, %v899
        %v1264 = vpack.c.b16 %v907, %v900
        %v1265 = vpack.c.b16 %v908, %v901
        %v1266 = vpack.c.b16 %v909, %v902
        %v1267 = vpack.c.b16 %v917, %v910
        %v1268 = vpack.c.b16 %v918, %v911
        %v1269 = vpack.c.b16 %v919, %v912
        %v1270 = vpack.c.b16 %v920, %v913
        %v1271 = vpack.c.b16 %v921, %v914
        %v1272 = vpack.c.b16 %v922, %v915
        %v1273 = vpack.c.b16 %v923, %v916
        %v1274 = vpack.c.b16 %v931, %v924
        %v1275 = vpack.c.b16 %v932, %v925
        %v1276 = vpack.c.b16 %v933, %v926
        %v1277 = vpack.c.b16 %v934, %v927
        %v1278 = vpack.c.b16 %v935, %v928
        %v1279 = vpack.c.b16 %v936, %v929
        %v1280 = vpack.c.b16 %v937, %v930
        %v1281 = vpack.c.b16 %v945, %v938
        %v1282 = vpack.c.b16 %v946, %v939
        %v1283 = vpack.c.b16 %v947, %v940
        %v1284 = vpack.c.b16 %v948, %v941
        %v1285 = vpack.c.b16 %v949, %v942
        %v1286 = vpack.c.b16 %v950, %v943
        %v1287 = vpack.c.b16 %v951, %v944
        %v1288 = vpack.c.b16 %v959, %v952
        %v1289 = vpack.c.b16 %v960, %v953
        %v1290 = vpack.c.b16 %v961, %v954
        %v1291 = vpack.c.b16 %v962, %v955
        %v1292 = vpack.c.b16 %v963, %v956
        %v1293 = vpack.c.b16 %v964, %v957
        %v1294 = vpack.c.b16 %v965, %v958
        %v1295 = vpack.c.b16 %v973, %v966
        %v1296 = vpack.c.b16 %v974, %v967
        %v1297 = vpack.c.b16 %v975, %v968
        %v1298 = vpack.c.b16 %v976, %v969
        %v1299 = vpack.c.b16 %v977, %v970
        %v1300 = vpack.c.b16 %v978, %v971
        %v1301 = vpack.c.b16 %v979, %v972
        %v1302 = vpack.c.b16 %v987, %v980
        %v1303 = vpack.c.b16 %v988, %v981
        %v1304 = vpack.c.b16 %v989, %v982
        %v1305 = vpack.c.b16 %v990, %v983
        %v1306 = vpack.c.b16 %v991, %v984
        %v1307 = vpack.c.b16 %v992, %v985
        %v1308 = vpack.c.b16 %v993, %v986
        %v1309 = vpack.c.b16 %v1001, %v994
        %v1310 = vpack.c.b16 %v1002, %v995
        %v1311 = vpack.c.b16 %v1003, %v996
        %v1312 = vpack.c.b16 %v1004, %v997
        %v1313 = vpack.c.b16 %v1005, %v998
        %v1314 = vpack.c.b16 %v1006, %v999
        %v1315 = vpack.c.b16 %v1007, %v1000
        %v1316 = vpack.c.b16 %v1015, %v1008
        %v1317 = vpack.c.b16 %v1016, %v1009
        %v1318 = vpack.c.b16 %v1017, %v1010
        %v1319 = vpack.c.b16 %v1018, %v1011
        %v1320 = vpack.c.b16 %v1019, %v1012
        %v1321 = vpack.c.b16 %v1020, %v1013
        %v1322 = vpack.c.b16 %v1021, %v1014
        %v1323 = vpack.c.b16 %v1029, %v1022
        %v1324 = vpack.c.b16 %v1030, %v1023
        %v1325 = vpack.c.b16 %v1031, %v1024
        %v1326 = vpack.c.b16 %v1032, %v1025
        %v1327 = vpack.c.b16 %v1033, %v1026
        %v1328 = vpack.c.b16 %v1034, %v1027
        %v1329 = vpack.c.b16 %v1035, %v1028
        %v1330 = vpack.c.b16 %v1043, %v1036
        %v1331 = vpack.c.b16 %v1044, %v1037
        %v1332 = vpack.c.b16 %v1045, %v1038
        %v1333 = vpack.c.b16 %v1046, %v1039
        %v1334 = vpack.c.b16 %v1047, %v1040
        %v1335 = vpack.c.b16 %v1048, %v1041
        %v1336 = vpack.c.b16 %v1049, %v1042
        %v1337 = vpack.c.b16 %v1057, %v1050
        %v1338 = vpack.c.b16 %v1058, %v1051
        %v1339 = vpack.c.b16 %v1059, %v1052
        %v1340 = vpack.c.b16 %v1060, %v1053
        %v1341 = vpack.c.b16 %v1061, %v1054
        %v1342 = vpack.c.b16 %v1062, %v1055
        %v1343 = vpack.c.b16 %v1063, %v1056
        %v1344 = vpack.c.b16 %v1071, %v1064
        %v1345 = vpack.c.b16 %v1072, %v1065
        %v1346 = vpack.c.b16 %v1073, %v1066
        %v1347 = vpack.c.b16 %v1074, %v1067
        %v1348 = vpack.c.b16 %v1075, %v1068
        %v1349 = vpack.c.b16 %v1076, %v1069
        %v1350 = vpack.c.b16 %v1077, %v1070
        %v1351 = vpack.c.b16 %v1085, %v1078
        %v1352 = vpack.c.b16 %v1086, %v1079
        %v1353 = vpack.c.b16 %v1087, %v1080
        %v1354 = vpack.c.b16 %v1088, %v1081
        %v1355 = vpack.c.b16 %v1089, %v1082
        %v1356 = vpack.c.b16 %v1090, %v1083
        %v1357 = vpack.c.b16 %v1091, %v1084
        %v1358 = vpack.c.b16 %v1099, %v1092
        %v1359 = vpack.c.b16 %v1100, %v1093
        %v1360 = vpack.c.b16 %v1101, %v1094
        %v1361 = vpack.c.b16 %v1102, %v1095
        %v1362 = vpack.c.b16 %v1103, %v1096
        %v1363 = vpack.c.b16 %v1104, %v1097
        %v1364 = vpack.c.b16 %v1105, %v1098
        %v1365 = vpack.c.b16 %v1113, %v1106
        %v1366 = vpack.c.b16 %v1114, %v1107
        %v1367 = vpack.c.b16 %v1115, %v1108
        %v1368 = vpack.c.b16 %v1116, %v1109
        %v1369 = vpack.c.b16 %v1117, %v1110
        %v1370 = vpack.c.b16 %v1118, %v1111
        %v1371 = vpack.c.b16 %v1119, %v1112
        %v1372 = vpack.c.b16 %v1127, %v1120
        %v1373 = vpack.c.b16 %v1128, %v1121
        %v1374 = vpack.c.b16 %v1129, %v1122
        %v1375 = vpack.c.b16 %v1130, %v1123
        %v1376 = vpack.c.b16 %v1131, %v1124
        %v1377 = vpack.c.b16 %v1132, %v1125
        %v1378 = vpack.c.b16 %v1133, %v1126
        %v1379 = vpack.c.b16 %v1141, %v1134
        %v1380 = vpack.c.b16 %v1142, %v1135
        %v1381 = vpack.c.b16 %v1143, %v1136
        %v1382 = vpack.c.b16 %v1144, %v1137
        %v1383 = vpack.c.b16 %v1145, %v1138
        %v1384 = vpack.c.b16 %v1146, %v1139
        %v1385 = vpack.c.b16 %v1147, %v1140
        %v1386 = vpack.c.b16 %v1155, %v1148
        %v1387 = vpack.c.b16 %v1156, %v1149
        %v1388 = vpack.c.b16 %v1157, %v1150
        %v1389 = vpack.c.b16 %v1158, %v1151
        %v1390 = vpack.c.b16 %v1159, %v1152
        %v1391 = vpack.c.b16 %v1160, %v1153
        %v1392 = vpack.c.b16 %v1161, %v1154
        %v1393 = vpack.c.b16 %v1169, %v1162
        %v1394 = vpack.c.b16 %v1170, %v1163
        %v1395 = vpack.c.b16 %v1171, %v1164
        %v1396 = vpack.c.b16 %v1172, %v1165
        %v1397 = vpack.c.b16 %v1173, %v1166
        %v1398 = vpack.c.b16 %v1174, %v1167
        %v1399 = vpack.c.b16 %v1175, %v1168
        %v1400 = vpack.c.b16 %v1183, %v1176
        %v1401 = vpack.c.b16 %v1184, %v1177
        %v1402 = vpack.c.b16 %v1185, %v1178
        %v1403 = vpack.c.b16 %v1186, %v1179
        %v1404 = vpack.c.b16 %v1187, %v1180
        %v1405 = vpack.c.b16 %v1188, %v1181
        %v1406 = vpack.c.b16 %v1189, %v1182
        %v1407 = vpack.c.b16 %v1197, %v1190
        %v1408 = vpack.c.b16 %v1198, %v1191
        %v1409 = vpack.c.b16 %v1199, %v1192
        %v1410 = vpack.c.b16 %v1200, %v1193
        %v1411 = vpack.c.b16 %v1201, %v1194
        %v1412 = vpack.c.b16 %v1202, %v1195
        %v1413 = vpack.c.b16 %v1203, %v1196
        %v1414 = vpack.c.b16 %v1211, %v1204
        %v1415 = vpack.c.b16 %v1212, %v1205
        %v1416 = vpack.c.b16 %v1213, %v1206
        %v1417 = vpack.c.b16 %v1214, %v1207
        %v1418 = vpack.c.b16 %v1215, %v1208
        %v1419 = vpack.c.b16 %v1216, %v1209
        %v1420 = vpack.c.b16 %v1217, %v1210
        %v1421 = vpack.c.b16 %v1225, %v1218
        %v1422 = vpack.c.b16 %v1226, %v1219
        %v1423 = vpack.c.b16 %v1227, %v1220
        %v1424 = vpack.c.b16 %v1228, %v1221
        %v1425 = vpack.c.b16 %v1229, %v1222
        %v1426 = vpack.c.b16 %v1230, %v1223
        %v1427 = vpack.c.b16 %v1231, %v1224
        %vm1624 = vcmask 523264
        %v1626 = vsel %vm1624, %v612, 0
        %1628 = vmatprep.subr.bf16.mxu0 %v1282
        %1629 = vmatpush1.bf16.msra.mxu0 %v1281
        %1630 = vmatprep.subr.bf16.mxu0 %v1275
        %1631 = vmatpush1.bf16.msra.mxu0 %v1274
        %1632 = vmatprep.subr.bf16.mxu0 %v1268
        %1633 = vmatpush1.bf16.msra.mxu0 %v1267
        %1634 = vmatprep.subr.bf16.mxu0 %v1261
        %1635 = vmatpush1.bf16.msra.mxu0 %v1260
        %1636 = vmatprep.subr.bf16.mxu0 %v1254
        %1637 = vmatpush1.bf16.msra.mxu0 %v1253
        %1638 = vmatprep.subr.bf16.mxu0 %v1247
        %1639 = vmatpush1.bf16.msra.mxu0 %v1246
        %1640 = vmatprep.subr.bf16.mxu0 %v1240
        %1641 = vmatpush1.bf16.msra.mxu0 %v1239
        %1642 = vmatprep.subr.bf16.mxu0 %v1233
        %1643 = vmatpush1.bf16.msra.mxu0 %v1232
        %1644 = vmatprep.subr.bf16.mxu0 %v1338
        %1645 = vmatpush2.bf16.msra.mxu0 %v1337
        %1646 = vmatprep.subr.bf16.mxu0 %v1331
        %1647 = vmatpush2.bf16.msra.mxu0 %v1330
        %1648 = vmatprep.subr.bf16.mxu0 %v1324
        %1649 = vmatpush2.bf16.msra.mxu0 %v1323
        %1650 = vmatprep.subr.bf16.mxu0 %v1317
        %1651 = vmatpush2.bf16.msra.mxu0 %v1316
        %1652 = vmatprep.subr.bf16.mxu0 %v1310
        %1653 = vmatpush2.bf16.msra.mxu0 %v1309
        %1654 = vmatprep.subr.bf16.mxu0 %v1303
        %1655 = vmatpush2.bf16.msra.mxu0 %v1302
        %1656 = vmatprep.subr.bf16.mxu0 %v1296
        %1657 = vmatpush2.bf16.msra.mxu0 %v1295
        %1658 = vmatprep.subr.bf16.mxu0 %v1289
        %1659 = vmatpush2.bf16.msra.mxu0 %v1288
        %1660 = vmatprep.mubr.bf16.mxu0 %v610
        %1661 = vmatmul.mubr.bf16.gmra.mxu0 %v609
        %v1662 = vpop.f32.mrf.mxu0
        %v1663 = vadd.f32 %v571, %v1662
        %v1664 = vpop.f32.mrf.mxu0
        %v1665 = vadd.f32 %v575, %v1664
        %v1666 = vpop.f32.mrf.mxu0
        %v1667 = vpop.f32.mrf.mxu0
        %1668 = vdwg.mxu0
        %1669 = vmatprep.subr.bf16.mxu0 %v1394
        %1670 = vmatpush1.bf16.msra.mxu0 %v1393
        %1671 = vmatprep.subr.bf16.mxu0 %v1387
        %1672 = vmatpush1.bf16.msra.mxu0 %v1386
        %1673 = vmatprep.subr.bf16.mxu0 %v1380
        %1674 = vmatpush1.bf16.msra.mxu0 %v1379
        %1675 = vmatprep.subr.bf16.mxu0 %v1373
        %1676 = vmatpush1.bf16.msra.mxu0 %v1372
        %1677 = vmatprep.subr.bf16.mxu0 %v1366
        %1678 = vmatpush1.bf16.msra.mxu0 %v1365
        %1679 = vmatprep.subr.bf16.mxu0 %v1359
        %1680 = vmatpush1.bf16.msra.mxu0 %v1358
        %1681 = vmatprep.subr.bf16.mxu0 %v1352
        %1682 = vmatpush1.bf16.msra.mxu0 %v1351
        %1683 = vmatprep.subr.bf16.mxu0 %v1345
        %1684 = vmatpush1.bf16.msra.mxu0 %v1344
        %1685 = vmatprep.subr.bf16.mxu0 0
        %1686 = vmatpush2.bf16.msra.mxu0 0
        %1687 = vmatprep.subr.bf16.mxu0 0
        %1688 = vmatpush2.bf16.msra.mxu0 0
        %1689 = vmatprep.subr.bf16.mxu0 0
        %1690 = vmatpush2.bf16.msra.mxu0 0
        %1691 = vmatprep.subr.bf16.mxu0 0
        %1692 = vmatpush2.bf16.msra.mxu0 0
        %1693 = vmatprep.subr.bf16.mxu0 %v1422
        %1694 = vmatpush2.bf16.msra.mxu0 %v1421
        %1695 = vmatprep.subr.bf16.mxu0 %v1415
        %1696 = vmatpush2.bf16.msra.mxu0 %v1414
        %1697 = vmatprep.subr.bf16.mxu0 %v1408
        %1698 = vmatpush2.bf16.msra.mxu0 %v1407
        %1699 = vmatprep.subr.bf16.mxu0 %v1401
        %1700 = vmatpush2.bf16.msra.mxu0 %v1400
        %1701 = vmatprep.mubr.bf16.mxu0 %v1626
        %1702 = vmatmul.mubr.bf16.gmra.mxu0 %v611
        %v1703 = vpop.f32.mrf.mxu0
        %v1704 = vadd.f32 %v1663, %v1703
        %v1705 = vpop.f32.mrf.mxu0
        %v1706 = vadd.f32 %v1665, %v1705
        %v1707 = vpop.f32.mrf.mxu0
        %v1708 = vpop.f32.mrf.mxu0
        %1709 = vdwg.mxu0
        %1710 = vmatprep.subr.bf16.mxu0 %v1284
        %1711 = vmatpush1.bf16.msra.mxu0 %v1283
        %1712 = vmatprep.subr.bf16.mxu0 %v1277
        %1713 = vmatpush1.bf16.msra.mxu0 %v1276
        %1714 = vmatprep.subr.bf16.mxu0 %v1270
        %1715 = vmatpush1.bf16.msra.mxu0 %v1269
        %1716 = vmatprep.subr.bf16.mxu0 %v1263
        %1717 = vmatpush1.bf16.msra.mxu0 %v1262
        %1718 = vmatprep.subr.bf16.mxu0 %v1256
        %1719 = vmatpush1.bf16.msra.mxu0 %v1255
        %1720 = vmatprep.subr.bf16.mxu0 %v1249
        %1721 = vmatpush1.bf16.msra.mxu0 %v1248
        %1722 = vmatprep.subr.bf16.mxu0 %v1242
        %1723 = vmatpush1.bf16.msra.mxu0 %v1241
        %1724 = vmatprep.subr.bf16.mxu0 %v1235
        %1725 = vmatpush1.bf16.msra.mxu0 %v1234
        %1726 = vmatprep.subr.bf16.mxu0 %v1340
        %1727 = vmatpush2.bf16.msra.mxu0 %v1339
        %1728 = vmatprep.subr.bf16.mxu0 %v1333
        %1729 = vmatpush2.bf16.msra.mxu0 %v1332
        %1730 = vmatprep.subr.bf16.mxu0 %v1326
        %1731 = vmatpush2.bf16.msra.mxu0 %v1325
        %1732 = vmatprep.subr.bf16.mxu0 %v1319
        %1733 = vmatpush2.bf16.msra.mxu0 %v1318
        %1734 = vmatprep.subr.bf16.mxu0 %v1312
        %1735 = vmatpush2.bf16.msra.mxu0 %v1311
        %1736 = vmatprep.subr.bf16.mxu0 %v1305
        %1737 = vmatpush2.bf16.msra.mxu0 %v1304
        %1738 = vmatprep.subr.bf16.mxu0 %v1298
        %1739 = vmatpush2.bf16.msra.mxu0 %v1297
        %1740 = vmatprep.subr.bf16.mxu0 %v1291
        %1741 = vmatpush2.bf16.msra.mxu0 %v1290
        %1742 = vmatprep.mubr.bf16.mxu0 %v610
        %1743 = vmatmul.mubr.bf16.gmra.mxu0 %v609
        %v1744 = vpop.f32.mrf.mxu0
        %v1745 = vadd.f32 %v579, %v1744
        %v1746 = vpop.f32.mrf.mxu0
        %v1747 = vadd.f32 %v583, %v1746
        %v1748 = vpop.f32.mrf.mxu0
        %v1749 = vpop.f32.mrf.mxu0
        %1750 = vdwg.mxu0
        %1751 = vmatprep.subr.bf16.mxu0 %v1396
        %1752 = vmatpush1.bf16.msra.mxu0 %v1395
        %1753 = vmatprep.subr.bf16.mxu0 %v1389
        %1754 = vmatpush1.bf16.msra.mxu0 %v1388
        %1755 = vmatprep.subr.bf16.mxu0 %v1382
        %1756 = vmatpush1.bf16.msra.mxu0 %v1381
        %1757 = vmatprep.subr.bf16.mxu0 %v1375
        %1758 = vmatpush1.bf16.msra.mxu0 %v1374
        %1759 = vmatprep.subr.bf16.mxu0 %v1368
        %1760 = vmatpush1.bf16.msra.mxu0 %v1367
        %1761 = vmatprep.subr.bf16.mxu0 %v1361
        %1762 = vmatpush1.bf16.msra.mxu0 %v1360
        %1763 = vmatprep.subr.bf16.mxu0 %v1354
        %1764 = vmatpush1.bf16.msra.mxu0 %v1353
        %1765 = vmatprep.subr.bf16.mxu0 %v1347
        %1766 = vmatpush1.bf16.msra.mxu0 %v1346
        %1767 = vmatprep.subr.bf16.mxu0 0
        %1768 = vmatpush2.bf16.msra.mxu0 0
        %1769 = vmatprep.subr.bf16.mxu0 0
        %1770 = vmatpush2.bf16.msra.mxu0 0
        %1771 = vmatprep.subr.bf16.mxu0 0
        %1772 = vmatpush2.bf16.msra.mxu0 0
        %1773 = vmatprep.subr.bf16.mxu0 0
        %1774 = vmatpush2.bf16.msra.mxu0 0
        %1775 = vmatprep.subr.bf16.mxu0 %v1424
        %1776 = vmatpush2.bf16.msra.mxu0 %v1423
        %1777 = vmatprep.subr.bf16.mxu0 %v1417
        %1778 = vmatpush2.bf16.msra.mxu0 %v1416
        %1779 = vmatprep.subr.bf16.mxu0 %v1410
        %1780 = vmatpush2.bf16.msra.mxu0 %v1409
        %1781 = vmatprep.subr.bf16.mxu0 %v1403
        %1782 = vmatpush2.bf16.msra.mxu0 %v1402
        %1783 = vmatprep.mubr.bf16.mxu0 %v1626
        %1784 = vmatmul.mubr.bf16.gmra.mxu0 %v611
        %v1785 = vpop.f32.mrf.mxu0
        %v1786 = vadd.f32 %v1745, %v1785
        %v1787 = vpop.f32.mrf.mxu0
        %v1788 = vadd.f32 %v1747, %v1787
        %v1789 = vpop.f32.mrf.mxu0
        %v1790 = vpop.f32.mrf.mxu0
        %1791 = vdwg.mxu0
        %1792 = vmatprep.subr.bf16.mxu0 %v1286
        %1793 = vmatpush1.bf16.msra.mxu0 %v1285
        %1794 = vmatprep.subr.bf16.mxu0 %v1279
        %1795 = vmatpush1.bf16.msra.mxu0 %v1278
        %1796 = vmatprep.subr.bf16.mxu0 %v1272
        %1797 = vmatpush1.bf16.msra.mxu0 %v1271
        %1798 = vmatprep.subr.bf16.mxu0 %v1265
        %1799 = vmatpush1.bf16.msra.mxu0 %v1264
        %1800 = vmatprep.subr.bf16.mxu0 %v1258
        %1801 = vmatpush1.bf16.msra.mxu0 %v1257
        %1802 = vmatprep.subr.bf16.mxu0 %v1251
        %1803 = vmatpush1.bf16.msra.mxu0 %v1250
        %1804 = vmatprep.subr.bf16.mxu0 %v1244
        %1805 = vmatpush1.bf16.msra.mxu0 %v1243
        %1806 = vmatprep.subr.bf16.mxu0 %v1237
        %1807 = vmatpush1.bf16.msra.mxu0 %v1236
        %1808 = vmatprep.subr.bf16.mxu0 %v1342
        %1809 = vmatpush2.bf16.msra.mxu0 %v1341
        %1810 = vmatprep.subr.bf16.mxu0 %v1335
        %1811 = vmatpush2.bf16.msra.mxu0 %v1334
        %1812 = vmatprep.subr.bf16.mxu0 %v1328
        %1813 = vmatpush2.bf16.msra.mxu0 %v1327
        %1814 = vmatprep.subr.bf16.mxu0 %v1321
        %1815 = vmatpush2.bf16.msra.mxu0 %v1320
        %1816 = vmatprep.subr.bf16.mxu0 %v1314
        %1817 = vmatpush2.bf16.msra.mxu0 %v1313
        %1818 = vmatprep.subr.bf16.mxu0 %v1307
        %1819 = vmatpush2.bf16.msra.mxu0 %v1306
        %1820 = vmatprep.subr.bf16.mxu0 %v1300
        %1821 = vmatpush2.bf16.msra.mxu0 %v1299
        %1822 = vmatprep.subr.bf16.mxu0 %v1293
        %1823 = vmatpush2.bf16.msra.mxu0 %v1292
        %1824 = vmatprep.mubr.bf16.mxu0 %v610
        %1825 = vmatmul.mubr.bf16.gmra.mxu0 %v609
        %v1826 = vpop.f32.mrf.mxu0
        %v1827 = vadd.f32 %v587, %v1826
        %v1828 = vpop.f32.mrf.mxu0
        %v1829 = vadd.f32 %v591, %v1828
        %v1830 = vpop.f32.mrf.mxu0
        %v1831 = vpop.f32.mrf.mxu0
        %1832 = vdwg.mxu0
        %1833 = vmatprep.subr.bf16.mxu0 %v1398
        %1834 = vmatpush1.bf16.msra.mxu0 %v1397
        %1835 = vmatprep.subr.bf16.mxu0 %v1391
        %1836 = vmatpush1.bf16.msra.mxu0 %v1390
        %1837 = vmatprep.subr.bf16.mxu0 %v1384
        %1838 = vmatpush1.bf16.msra.mxu0 %v1383
        %1839 = vmatprep.subr.bf16.mxu0 %v1377
        %1840 = vmatpush1.bf16.msra.mxu0 %v1376
        %1841 = vmatprep.subr.bf16.mxu0 %v1370
        %1842 = vmatpush1.bf16.msra.mxu0 %v1369
        %1843 = vmatprep.subr.bf16.mxu0 %v1363
        %1844 = vmatpush1.bf16.msra.mxu0 %v1362
        %1845 = vmatprep.subr.bf16.mxu0 %v1356
        %1846 = vmatpush1.bf16.msra.mxu0 %v1355
        %1847 = vmatprep.subr.bf16.mxu0 %v1349
        %1848 = vmatpush1.bf16.msra.mxu0 %v1348
        %1849 = vmatprep.subr.bf16.mxu0 0
        %1850 = vmatpush2.bf16.msra.mxu0 0
        %1851 = vmatprep.subr.bf16.mxu0 0
        %1852 = vmatpush2.bf16.msra.mxu0 0
        %1853 = vmatprep.subr.bf16.mxu0 0
        %1854 = vmatpush2.bf16.msra.mxu0 0
        %1855 = vmatprep.subr.bf16.mxu0 0
        %1856 = vmatpush2.bf16.msra.mxu0 0
        %1857 = vmatprep.subr.bf16.mxu0 %v1426
        %1858 = vmatpush2.bf16.msra.mxu0 %v1425
        %1859 = vmatprep.subr.bf16.mxu0 %v1419
        %1860 = vmatpush2.bf16.msra.mxu0 %v1418
        %1861 = vmatprep.subr.bf16.mxu0 %v1412
        %1862 = vmatpush2.bf16.msra.mxu0 %v1411
        %1863 = vmatprep.subr.bf16.mxu0 %v1405
        %1864 = vmatpush2.bf16.msra.mxu0 %v1404
        %1865 = vmatprep.mubr.bf16.mxu0 %v1626
        %1866 = vmatmul.mubr.bf16.gmra.mxu0 %v611
        %v1867 = vpop.f32.mrf.mxu0
        %v1868 = vadd.f32 %v1827, %v1867
        %v1869 = vpop.f32.mrf.mxu0
        %v1870 = vadd.f32 %v1829, %v1869
        %v1871 = vpop.f32.mrf.mxu0
        %v1872 = vpop.f32.mrf.mxu0
        %1873 = vdwg.mxu0
        %1874 = vmatprep.subr.bf16.mxu0 0
        %1875 = vmatpush1.bf16.msra.mxu0 %v1287
        %1876 = vmatprep.subr.bf16.mxu0 0
        %1877 = vmatpush1.bf16.msra.mxu0 %v1280
        %1878 = vmatprep.subr.bf16.mxu0 0
        %1879 = vmatpush1.bf16.msra.mxu0 %v1273
        %1880 = vmatprep.subr.bf16.mxu0 0
        %1881 = vmatpush1.bf16.msra.mxu0 %v1266
        %1882 = vmatprep.subr.bf16.mxu0 0
        %1883 = vmatpush1.bf16.msra.mxu0 %v1259
        %1884 = vmatprep.subr.bf16.mxu0 0
        %1885 = vmatpush1.bf16.msra.mxu0 %v1252
        %1886 = vmatprep.subr.bf16.mxu0 0
        %1887 = vmatpush1.bf16.msra.mxu0 %v1245
        %1888 = vmatprep.subr.bf16.mxu0 0
        %1889 = vmatpush1.bf16.msra.mxu0 %v1238
        %1890 = vmatprep.subr.bf16.mxu0 0
        %1891 = vmatpush2.bf16.msra.mxu0 %v1343
        %1892 = vmatprep.subr.bf16.mxu0 0
        %1893 = vmatpush2.bf16.msra.mxu0 %v1336
        %1894 = vmatprep.subr.bf16.mxu0 0
        %1895 = vmatpush2.bf16.msra.mxu0 %v1329
        %1896 = vmatprep.subr.bf16.mxu0 0
        %1897 = vmatpush2.bf16.msra.mxu0 %v1322
        %1898 = vmatprep.subr.bf16.mxu0 0
        %1899 = vmatpush2.bf16.msra.mxu0 %v1315
        %1900 = vmatprep.subr.bf16.mxu0 0
        %1901 = vmatpush2.bf16.msra.mxu0 %v1308
        %1902 = vmatprep.subr.bf16.mxu0 0
        %1903 = vmatpush2.bf16.msra.mxu0 %v1301
        %1904 = vmatprep.subr.bf16.mxu0 0
        %1905 = vmatpush2.bf16.msra.mxu0 %v1294
        %1906 = vmatprep.mubr.bf16.mxu0 %v610
        %1907 = vmatmul.mubr.bf16.gmra.mxu0 %v609
        %v1908 = vpop.f32.mrf.mxu0
        %v1909 = vadd.f32 %v595, %v1908
        %v1910 = vpop.f32.mrf.mxu0
        %v1911 = vpop.f32.mrf.mxu0
        %v1912 = vpop.f32.mrf.mxu0
        %1913 = vdwg.mxu0
        %1914 = vmatprep.subr.bf16.mxu0 0
        %1915 = vmatpush1.bf16.msra.mxu0 %v1399
        %1916 = vmatprep.subr.bf16.mxu0 0
        %1917 = vmatpush1.bf16.msra.mxu0 %v1392
        %1918 = vmatprep.subr.bf16.mxu0 0
        %1919 = vmatpush1.bf16.msra.mxu0 %v1385
        %1920 = vmatprep.subr.bf16.mxu0 0
        %1921 = vmatpush1.bf16.msra.mxu0 %v1378
        %1922 = vmatprep.subr.bf16.mxu0 0
        %1923 = vmatpush1.bf16.msra.mxu0 %v1371
        %1924 = vmatprep.subr.bf16.mxu0 0
        %1925 = vmatpush1.bf16.msra.mxu0 %v1364
        %1926 = vmatprep.subr.bf16.mxu0 0
        %1927 = vmatpush1.bf16.msra.mxu0 %v1357
        %1928 = vmatprep.subr.bf16.mxu0 0
        %1929 = vmatpush1.bf16.msra.mxu0 %v1350
        %1930 = vmatprep.subr.bf16.mxu0 0
        %1931 = vmatpush2.bf16.msra.mxu0 0
        %1932 = vmatprep.subr.bf16.mxu0 0
        %1933 = vmatpush2.bf16.msra.mxu0 0
        %1934 = vmatprep.subr.bf16.mxu0 0
        %1935 = vmatpush2.bf16.msra.mxu0 0
        %1936 = vmatprep.subr.bf16.mxu0 0
        %1937 = vmatpush2.bf16.msra.mxu0 0
        %1938 = vmatprep.subr.bf16.mxu0 0
        %1939 = vmatpush2.bf16.msra.mxu0 %v1427
        %1940 = vmatprep.subr.bf16.mxu0 0
        %1941 = vmatpush2.bf16.msra.mxu0 %v1420
        %1942 = vmatprep.subr.bf16.mxu0 0
        %1943 = vmatpush2.bf16.msra.mxu0 %v1413
        %1944 = vmatprep.subr.bf16.mxu0 0
        %1945 = vmatpush2.bf16.msra.mxu0 %v1406
        %1946 = vmatprep.mubr.bf16.mxu0 %v1626
        %1947 = vmatmul.mubr.bf16.gmra.mxu0 %v611
        %v1948 = vpop.f32.mrf.mxu0
        %v1949 = vadd.f32 %v1909, %v1948
        %v1950 = vpop.f32.mrf.mxu0
        %v1951 = vpop.f32.mrf.mxu0
        %v1952 = vpop.f32.mrf.mxu0
        %1953 = vdwg.mxu0
        %v1954 = vmax.f32 %v1704, 0.0
        %v1955 = vmax.f32 %v1706, 0.0
        %v1956 = vmax.f32 %v1786, 0.0
        %v1957 = vmax.f32 %v1788, 0.0
        %v1958 = vmax.f32 %v1868, 0.0
        %v1959 = vmax.f32 %v1870, 0.0
        %v1960 = vmax.f32 %v1949, 0.0
        %v1961 = vld [vmem:[%s326] sm:$0xff]
        %v1962 = vpack.c.bf16 %v1954, %v1954
        %v1963 = vpack.c.bf16 %v1955, %v1955
        %v1964 = vpack.c.bf16 %v1956, %v1956
        %v1965 = vpack.c.bf16 %v1957, %v1957
        %v1966 = vpack.c.bf16 %v1958, %v1958
        %v1967 = vpack.c.bf16 %v1959, %v1959
        %v1968 = vpack.c.bf16 %v1960, %v1960
        %v1969 = vld [vmem:[%s274] sm:$0xf]
        %v1970 = vld [vmem:[%s274 + $0x4] sm:$0xf]
        %v1971 = vld [vmem:[%s274 + $0x8] sm:$0xf]
        %v1972 = vld [vmem:[%s274 + $0xc] sm:$0xf]
        %v1973 = vld [vmem:[%s274 + $0x10] sm:$0xf]
        %v1974 = vld [vmem:[%s274 + $0x14] sm:$0xf]
        %v1975 = vld [vmem:[%s274 + $0x18] sm:$0xf]
        %v1976 = vld [vmem:[%s274 + $0x1c] sm:$0xf]
        %v1977 = vld [vmem:[%s274 + $0x20] sm:$0xf]
        %v1978 = vld [vmem:[%s274 + $0x24] sm:$0xf]
        %v1979 = vld [vmem:[%s274 + $0x28] sm:$0xf]
        %v1980 = vld [vmem:[%s274 + $0x2c] sm:$0xf]
        %v1981 = vld [vmem:[%s274 + $0x30] sm:$0xf]
        %v1982 = vld [vmem:[%s274 + $0x34] sm:$0xf]
        %v1983 = vld [vmem:[%s274 + $0x38] sm:$0xf]
        %v1984 = vld [vmem:[%s274 + $0x3c] sm:$0xf]
        %v1985 = vld [vmem:[%s274 + $0x40] sm:$0xf]
        %v1986 = vld [vmem:[%s274 + $0x44] sm:$0xf]
        %v1987 = vld [vmem:[%s274 + $0x48] sm:$0xf]
        %v1988 = vld [vmem:[%s274 + $0x4c] sm:$0xf]
        %v1989 = vld [vmem:[%s274 + $0x50] sm:$0xf]
        %v1990 = vld [vmem:[%s274 + $0x54] sm:$0xf]
        %v1991 = vld [vmem:[%s274 + $0x58] sm:$0xf]
        %v1992 = vld [vmem:[%s274 + $0x5c] sm:$0xf]
        %v1993 = vld [vmem:[%s274 + $0x60] sm:$0xf]
        %v1994 = vld [vmem:[%s274 + $0x64] sm:$0xf]
        %v1995 = vld [vmem:[%s274 + $0x68] sm:$0xf]
        %v1996 = vld [vmem:[%s274 + $0x6c] sm:$0xf]
        %v1997 = vld [vmem:[%s274 + $0x70] sm:$0xf]
        %v1998 = vld [vmem:[%s274 + $0x74] sm:$0xf]
        %v1999 = vld [vmem:[%s274 + $0x78] sm:$0xf]
        %v2000 = vld [vmem:[%s274 + $0x7c] sm:$0xf]
        %v2001 = vld [vmem:[%s274 + $0x80] sm:$0xf]
        %v2002 = vld [vmem:[%s274 + $0x84] sm:$0xf]
        %v2003 = vld [vmem:[%s274 + $0x88] sm:$0xf]
        %v2004 = vld [vmem:[%s274 + $0x8c] sm:$0xf]
        %v2005 = vld [vmem:[%s274 + $0x90] sm:$0xf]
        %v2006 = vld [vmem:[%s274 + $0x94] sm:$0xf]
        %v2007 = vld [vmem:[%s274 + $0x98] sm:$0xf]
        %v2008 = vld [vmem:[%s274 + $0x9c] sm:$0xf]
        %v2009 = vld [vmem:[%s274 + $0xa0] sm:$0xf]
        %v2010 = vld [vmem:[%s274 + $0xa4] sm:$0xf]
        %v2011 = vld [vmem:[%s274 + $0xa8] sm:$0xf]
        %v2012 = vld [vmem:[%s274 + $0xac] sm:$0xf]
        %v2013 = vld [vmem:[%s274 + $0xb0] sm:$0xf]
        %v2014 = vld [vmem:[%s274 + $0xb4] sm:$0xf]
        %v2015 = vld [vmem:[%s274 + $0xb8] sm:$0xf]
        %v2016 = vld [vmem:[%s274 + $0xbc] sm:$0xf]
        %v2017 = vld [vmem:[%s274 + $0xc0] sm:$0xf]
        %v2018 = vld [vmem:[%s274 + $0xc4] sm:$0xf]
        %v2019 = vld [vmem:[%s274 + $0xc8] sm:$0xf]
        %v2020 = vld [vmem:[%s274 + $0xcc] sm:$0xf]
        %v2021 = vld [vmem:[%s274 + $0xd0] sm:$0xf]
        %v2022 = vld [vmem:[%s274 + $0xd4] sm:$0xf]
        %v2023 = vld [vmem:[%s274 + $0xd8] sm:$0xf]
        %v2024 = vld [vmem:[%s274 + $0xdc] sm:$0xf]
        %v2025 = vld [vmem:[%s274 + $0xe0] sm:$0xf]
        %v2026 = vld [vmem:[%s274 + $0xe4] sm:$0xf]
        %v2027 = vld [vmem:[%s274 + $0xe8] sm:$0xf]
        %v2028 = vld [vmem:[%s274 + $0xec] sm:$0xf]
        %v2029 = vld [vmem:[%s274 + $0xf0] sm:$0xf]
        %v2030 = vld [vmem:[%s274 + $0xf4] sm:$0xf]
        %v2031 = vld [vmem:[%s274 + $0xf8] sm:$0xf]
        %v2032 = vld [vmem:[%s274 + $0xfc] sm:$0xf]
        %v2033 = vld [vmem:[%s274 + $0x100] sm:$0xf]
        %v2034 = vld [vmem:[%s274 + $0x104] sm:$0xf]
        %v2035 = vld [vmem:[%s274 + $0x108] sm:$0xf]
        %v2036 = vld [vmem:[%s274 + $0x10c] sm:$0xf]
        %v2037 = vld [vmem:[%s274 + $0x110] sm:$0xf]
        %v2038 = vld [vmem:[%s274 + $0x114] sm:$0xf]
        %v2039 = vld [vmem:[%s274 + $0x118] sm:$0xf]
        %v2040 = vld [vmem:[%s274 + $0x11c] sm:$0xf]
        %v2041 = vld [vmem:[%s274 + $0x120] sm:$0xf]
        %v2042 = vld [vmem:[%s274 + $0x124] sm:$0xf]
        %v2043 = vld [vmem:[%s274 + $0x128] sm:$0xf]
        %v2044 = vld [vmem:[%s274 + $0x12c] sm:$0xf]
        %v2045 = vld [vmem:[%s274 + $0x130] sm:$0xf]
        %v2046 = vld [vmem:[%s274 + $0x134] sm:$0xf]
        %v2047 = vld [vmem:[%s274 + $0x138] sm:$0xf]
        %v2048 = vld [vmem:[%s274 + $0x13c] sm:$0xf]
        %v2049 = vld [vmem:[%s274 + $0x140] sm:$0xf]
        %v2050 = vld [vmem:[%s274 + $0x144] sm:$0xf]
        %v2051 = vld [vmem:[%s274 + $0x148] sm:$0xf]
        %v2052 = vld [vmem:[%s274 + $0x14c] sm:$0xf]
        %v2053 = vld [vmem:[%s274 + $0x150] sm:$0xf]
        %v2054 = vld [vmem:[%s274 + $0x154] sm:$0xf]
        %v2055 = vld [vmem:[%s274 + $0x158] sm:$0xf]
        %v2056 = vld [vmem:[%s274 + $0x15c] sm:$0xf]
        %v2057 = vld [vmem:[%s274 + $0x160] sm:$0xf]
        %v2058 = vld [vmem:[%s274 + $0x164] sm:$0xf]
        %v2059 = vld [vmem:[%s274 + $0x168] sm:$0xf]
        %v2060 = vld [vmem:[%s274 + $0x16c] sm:$0xf]
        %v2061 = vld [vmem:[%s274 + $0x170] sm:$0xf]
        %v2062 = vld [vmem:[%s274 + $0x174] sm:$0xf]
        %v2063 = vld [vmem:[%s274 + $0x178] sm:$0xf]
        %v2064 = vld [vmem:[%s274 + $0x17c] sm:$0xf]
        %v2065 = vld [vmem:[%s274 + $0x180] sm:$0xf]
        %v2066 = vld [vmem:[%s274 + $0x184] sm:$0xf]
        %v2067 = vld [vmem:[%s274 + $0x188] sm:$0xf]
        %v2068 = vld [vmem:[%s274 + $0x18c] sm:$0xf]
        %v2069 = vld [vmem:[%s274 + $0x190] sm:$0xf]
        %v2070 = vld [vmem:[%s274 + $0x194] sm:$0xf]
        %v2071 = vld [vmem:[%s274 + $0x198] sm:$0xf]
        %v2072 = vld [vmem:[%s274 + $0x19c] sm:$0xf]
        %v2073 = vld [vmem:[%s274 + $0x1a0] sm:$0xf]
        %v2074 = vld [vmem:[%s274 + $0x1a4] sm:$0xf]
        %v2075 = vld [vmem:[%s274 + $0x1a8] sm:$0xf]
        %v2076 = vld [vmem:[%s274 + $0x1ac] sm:$0xf]
        %v2077 = vld [vmem:[%s274 + $0x1b0] sm:$0xf]
        %v2078 = vld [vmem:[%s274 + $0x1b4] sm:$0xf]
        %v2079 = vld [vmem:[%s274 + $0x1b8] sm:$0xf]
        %v2080 = vld [vmem:[%s274 + $0x1bc] sm:$0xf]
        %v2193 = vunpack.c.l.b16 %v1969
        %v2194 = vunpack.c.l.b16 %v1970
        %v2195 = vunpack.c.l.b16 %v1971
        %v2196 = vunpack.c.l.b16 %v1972
        %v2197 = vunpack.c.l.b16 %v1973
        %v2198 = vunpack.c.l.b16 %v1974
        %v2199 = vunpack.c.l.b16 %v1975
        %v2200 = vunpack.c.l.b16 %v1976
        %v2201 = vunpack.c.l.b16 %v1977
        %v2202 = vunpack.c.l.b16 %v1978
        %v2203 = vunpack.c.l.b16 %v1979
        %v2204 = vunpack.c.l.b16 %v1980
        %v2205 = vunpack.c.l.b16 %v1981
        %v2206 = vunpack.c.l.b16 %v1982
        %v2207 = vunpack.c.l.b16 %v1983
        %v2208 = vunpack.c.l.b16 %v1984
        %v2209 = vunpack.c.l.b16 %v1985
        %v2210 = vunpack.c.l.b16 %v1986
        %v2211 = vunpack.c.l.b16 %v1987
        %v2212 = vunpack.c.l.b16 %v1988
        %v2213 = vunpack.c.l.b16 %v1989
        %v2214 = vunpack.c.l.b16 %v1990
        %v2215 = vunpack.c.l.b16 %v1991
        %v2216 = vunpack.c.l.b16 %v1992
        %v2217 = vunpack.c.l.b16 %v1993
        %v2218 = vunpack.c.l.b16 %v1994
        %v2219 = vunpack.c.l.b16 %v1995
        %v2220 = vunpack.c.l.b16 %v1996
        %v2221 = vunpack.c.l.b16 %v1997
        %v2222 = vunpack.c.l.b16 %v1998
        %v2223 = vunpack.c.l.b16 %v1999
        %v2224 = vunpack.c.l.b16 %v2000
        %v2225 = vunpack.c.l.b16 %v2001
        %v2226 = vunpack.c.l.b16 %v2002
        %v2227 = vunpack.c.l.b16 %v2003
        %v2228 = vunpack.c.l.b16 %v2004
        %v2229 = vunpack.c.l.b16 %v2005
        %v2230 = vunpack.c.l.b16 %v2006
        %v2231 = vunpack.c.l.b16 %v2007
        %v2232 = vunpack.c.l.b16 %v2008
        %v2233 = vunpack.c.l.b16 %v2009
        %v2234 = vunpack.c.l.b16 %v2010
        %v2235 = vunpack.c.l.b16 %v2011
        %v2236 = vunpack.c.l.b16 %v2012
        %v2237 = vunpack.c.l.b16 %v2013
        %v2238 = vunpack.c.l.b16 %v2014
        %v2239 = vunpack.c.l.b16 %v2015
        %v2240 = vunpack.c.l.b16 %v2016
        %v2241 = vunpack.c.l.b16 %v2017
        %v2242 = vunpack.c.l.b16 %v2018
        %v2243 = vunpack.c.l.b16 %v2019
        %v2244 = vunpack.c.l.b16 %v2020
        %v2245 = vunpack.c.l.b16 %v2021
        %v2246 = vunpack.c.l.b16 %v2022
        %v2247 = vunpack.c.l.b16 %v2023
        %v2248 = vunpack.c.l.b16 %v2024
        %v2249 = vunpack.c.l.b16 %v2025
        %v2250 = vunpack.c.l.b16 %v2026
        %v2251 = vunpack.c.l.b16 %v2027
        %v2252 = vunpack.c.l.b16 %v2028
        %v2253 = vunpack.c.l.b16 %v2029
        %v2254 = vunpack.c.l.b16 %v2030
        %v2255 = vunpack.c.l.b16 %v2031
        %v2256 = vunpack.c.l.b16 %v2032
        %v2257 = vunpack.c.l.b16 %v2033
        %v2258 = vunpack.c.l.b16 %v2034
        %v2259 = vunpack.c.l.b16 %v2035
        %v2260 = vunpack.c.l.b16 %v2036
        %v2261 = vunpack.c.l.b16 %v2037
        %v2262 = vunpack.c.l.b16 %v2038
        %v2263 = vunpack.c.l.b16 %v2039
        %v2264 = vunpack.c.l.b16 %v2040
        %v2265 = vunpack.c.l.b16 %v2041
        %v2266 = vunpack.c.l.b16 %v2042
        %v2267 = vunpack.c.l.b16 %v2043
        %v2268 = vunpack.c.l.b16 %v2044
        %v2269 = vunpack.c.l.b16 %v2045
        %v2270 = vunpack.c.l.b16 %v2046
        %v2271 = vunpack.c.l.b16 %v2047
        %v2272 = vunpack.c.l.b16 %v2048
        %v2273 = vunpack.c.l.b16 %v2049
        %v2274 = vunpack.c.l.b16 %v2050
        %v2275 = vunpack.c.l.b16 %v2051
        %v2276 = vunpack.c.l.b16 %v2052
        %v2277 = vunpack.c.l.b16 %v2053
        %v2278 = vunpack.c.l.b16 %v2054
        %v2279 = vunpack.c.l.b16 %v2055
        %v2280 = vunpack.c.l.b16 %v2056
        %v2281 = vunpack.c.l.b16 %v2057
        %v2282 = vunpack.c.l.b16 %v2058
        %v2283 = vunpack.c.l.b16 %v2059
        %v2284 = vunpack.c.l.b16 %v2060
        %v2285 = vunpack.c.l.b16 %v2061
        %v2286 = vunpack.c.l.b16 %v2062
        %v2287 = vunpack.c.l.b16 %v2063
        %v2288 = vunpack.c.l.b16 %v2064
        %v2289 = vunpack.c.l.b16 %v2065
        %v2290 = vunpack.c.l.b16 %v2066
        %v2291 = vunpack.c.l.b16 %v2067
        %v2292 = vunpack.c.l.b16 %v2068
        %v2293 = vunpack.c.l.b16 %v2069
        %v2294 = vunpack.c.l.b16 %v2070
        %v2295 = vunpack.c.l.b16 %v2071
        %v2296 = vunpack.c.l.b16 %v2072
        %v2297 = vunpack.c.l.b16 %v2073
        %v2298 = vunpack.c.l.b16 %v2074
        %v2299 = vunpack.c.l.b16 %v2075
        %v2300 = vunpack.c.l.b16 %v2076
        %v2301 = vunpack.c.l.b16 %v2077
        %v2302 = vunpack.c.l.b16 %v2078
        %v2303 = vunpack.c.l.b16 %v2079
        %v2304 = vunpack.c.l.b16 %v2080
        %v2305 = vpack.c.b16 %v2194, %v2193
        %v2306 = vpack.c.b16 %v2196, %v2195
        %v2307 = vpack.c.b16 %v2198, %v2197
        %v2308 = vpack.c.b16 %v2200, %v2199
        %v2309 = vpack.c.b16 %v2202, %v2201
        %v2310 = vpack.c.b16 %v2204, %v2203
        %v2311 = vpack.c.b16 %v2206, %v2205
        %v2312 = vpack.c.b16 %v2208, %v2207
        %v2313 = vpack.c.b16 %v2210, %v2209
        %v2314 = vpack.c.b16 %v2212, %v2211
        %v2315 = vpack.c.b16 %v2214, %v2213
        %v2316 = vpack.c.b16 %v2216, %v2215
        %v2317 = vpack.c.b16 %v2218, %v2217
        %v2318 = vpack.c.b16 %v2220, %v2219
        %v2319 = vpack.c.b16 %v2222, %v2221
        %v2320 = vpack.c.b16 %v2224, %v2223
        %v2321 = vpack.c.b16 %v2226, %v2225
        %v2322 = vpack.c.b16 %v2228, %v2227
        %v2323 = vpack.c.b16 %v2230, %v2229
        %v2324 = vpack.c.b16 %v2232, %v2231
        %v2325 = vpack.c.b16 %v2234, %v2233
        %v2326 = vpack.c.b16 %v2236, %v2235
        %v2327 = vpack.c.b16 %v2238, %v2237
        %v2328 = vpack.c.b16 %v2240, %v2239
        %v2329 = vpack.c.b16 %v2242, %v2241
        %v2330 = vpack.c.b16 %v2244, %v2243
        %v2331 = vpack.c.b16 %v2246, %v2245
        %v2332 = vpack.c.b16 %v2248, %v2247
        %v2333 = vpack.c.b16 %v2250, %v2249
        %v2334 = vpack.c.b16 %v2252, %v2251
        %v2335 = vpack.c.b16 %v2254, %v2253
        %v2336 = vpack.c.b16 %v2256, %v2255
        %v2337 = vpack.c.b16 %v2258, %v2257
        %v2338 = vpack.c.b16 %v2260, %v2259
        %v2339 = vpack.c.b16 %v2262, %v2261
        %v2340 = vpack.c.b16 %v2264, %v2263
        %v2341 = vpack.c.b16 %v2266, %v2265
        %v2342 = vpack.c.b16 %v2268, %v2267
        %v2343 = vpack.c.b16 %v2270, %v2269
        %v2344 = vpack.c.b16 %v2272, %v2271
        %v2345 = vpack.c.b16 %v2274, %v2273
        %v2346 = vpack.c.b16 %v2276, %v2275
        %v2347 = vpack.c.b16 %v2278, %v2277
        %v2348 = vpack.c.b16 %v2280, %v2279
        %v2349 = vpack.c.b16 %v2282, %v2281
        %v2350 = vpack.c.b16 %v2284, %v2283
        %v2351 = vpack.c.b16 %v2286, %v2285
        %v2352 = vpack.c.b16 %v2288, %v2287
        %v2353 = vpack.c.b16 %v2290, %v2289
        %v2354 = vpack.c.b16 %v2292, %v2291
        %v2355 = vpack.c.b16 %v2294, %v2293
        %v2356 = vpack.c.b16 %v2296, %v2295
        %v2357 = vpack.c.b16 %v2298, %v2297
        %v2358 = vpack.c.b16 %v2300, %v2299
        %v2359 = vpack.c.b16 %v2302, %v2301
        %v2360 = vpack.c.b16 %v2304, %v2303
        %2417 = vmatprep.subr.bf16.mxu0 0
        %2418 = vmatpush1.bf16.msra.mxu0 %v2312
        %2419 = vmatprep.subr.bf16.mxu0 0
        %2420 = vmatpush1.bf16.msra.mxu0 %v2311
        %2421 = vmatprep.subr.bf16.mxu0 0
        %2422 = vmatpush1.bf16.msra.mxu0 %v2310
        %2423 = vmatprep.subr.bf16.mxu0 0
        %2424 = vmatpush1.bf16.msra.mxu0 %v2309
        %2425 = vmatprep.subr.bf16.mxu0 0
        %2426 = vmatpush1.bf16.msra.mxu0 %v2308
        %2427 = vmatprep.subr.bf16.mxu0 0
        %2428 = vmatpush1.bf16.msra.mxu0 %v2307
        %2429 = vmatprep.subr.bf16.mxu0 0
        %2430 = vmatpush1.bf16.msra.mxu0 %v2306
        %2431 = vmatprep.subr.bf16.mxu0 0
        %2432 = vmatpush1.bf16.msra.mxu0 %v2305
        %2433 = vmatprep.subr.bf16.mxu0 0
        %2434 = vmatpush2.bf16.msra.mxu0 %v2320
        %2435 = vmatprep.subr.bf16.mxu0 0
        %2436 = vmatpush2.bf16.msra.mxu0 %v2319
        %2437 = vmatprep.subr.bf16.mxu0 0
        %2438 = vmatpush2.bf16.msra.mxu0 %v2318
        %2439 = vmatprep.subr.bf16.mxu0 0
        %2440 = vmatpush2.bf16.msra.mxu0 %v2317
        %2441 = vmatprep.subr.bf16.mxu0 0
        %2442 = vmatpush2.bf16.msra.mxu0 %v2316
        %2443 = vmatprep.subr.bf16.mxu0 0
        %2444 = vmatpush2.bf16.msra.mxu0 %v2315
        %2445 = vmatprep.subr.bf16.mxu0 0
        %2446 = vmatpush2.bf16.msra.mxu0 %v2314
        %2447 = vmatprep.subr.bf16.mxu0 0
        %2448 = vmatpush2.bf16.msra.mxu0 %v2313
        %2449 = vmatprep.mubr.bf16.mxu0 %v1963
        %2450 = vmatmul.mubr.bf16.gmra.mxu0 %v1962
        %v2451 = vpop.f32.mrf.mxu0
        %v2452 = vadd.f32 0.0, %v2451
        %v2453 = vpop.f32.mrf.mxu0
        %v2454 = vpop.f32.mrf.mxu0
        %v2455 = vpop.f32.mrf.mxu0
        %2456 = vdwg.mxu0
        %2457 = vmatprep.subr.bf16.mxu0 0
        %2458 = vmatpush1.bf16.msra.mxu0 %v2328
        %2459 = vmatprep.subr.bf16.mxu0 0
        %2460 = vmatpush1.bf16.msra.mxu0 %v2327
        %2461 = vmatprep.subr.bf16.mxu0 0
        %2462 = vmatpush1.bf16.msra.mxu0 %v2326
        %2463 = vmatprep.subr.bf16.mxu0 0
        %2464 = vmatpush1.bf16.msra.mxu0 %v2325
        %2465 = vmatprep.subr.bf16.mxu0 0
        %2466 = vmatpush1.bf16.msra.mxu0 %v2324
        %2467 = vmatprep.subr.bf16.mxu0 0
        %2468 = vmatpush1.bf16.msra.mxu0 %v2323
        %2469 = vmatprep.subr.bf16.mxu0 0
        %2470 = vmatpush1.bf16.msra.mxu0 %v2322
        %2471 = vmatprep.subr.bf16.mxu0 0
        %2472 = vmatpush1.bf16.msra.mxu0 %v2321
        %2473 = vmatprep.subr.bf16.mxu0 0
        %2474 = vmatpush2.bf16.msra.mxu0 %v2336
        %2475 = vmatprep.subr.bf16.mxu0 0
        %2476 = vmatpush2.bf16.msra.mxu0 %v2335
        %2477 = vmatprep.subr.bf16.mxu0 0
        %2478 = vmatpush2.bf16.msra.mxu0 %v2334
        %2479 = vmatprep.subr.bf16.mxu0 0
        %2480 = vmatpush2.bf16.msra.mxu0 %v2333
        %2481 = vmatprep.subr.bf16.mxu0 0
        %2482 = vmatpush2.bf16.msra.mxu0 %v2332
        %2483 = vmatprep.subr.bf16.mxu0 0
        %2484 = vmatpush2.bf16.msra.mxu0 %v2331
        %2485 = vmatprep.subr.bf16.mxu0 0
        %2486 = vmatpush2.bf16.msra.mxu0 %v2330
        %2487 = vmatprep.subr.bf16.mxu0 0
        %2488 = vmatpush2.bf16.msra.mxu0 %v2329
        %2489 = vmatprep.mubr.bf16.mxu0 %v1965
        %2490 = vmatmul.mubr.bf16.gmra.mxu0 %v1964
        %v2491 = vpop.f32.mrf.mxu0
        %v2492 = vadd.f32 %v2452, %v2491
        %v2493 = vpop.f32.mrf.mxu0
        %v2494 = vpop.f32.mrf.mxu0
        %v2495 = vpop.f32.mrf.mxu0
        %2496 = vdwg.mxu0
        %2497 = vmatprep.subr.bf16.mxu0 0
        %2498 = vmatpush1.bf16.msra.mxu0 %v2344
        %2499 = vmatprep.subr.bf16.mxu0 0
        %2500 = vmatpush1.bf16.msra.mxu0 %v2343
        %2501 = vmatprep.subr.bf16.mxu0 0
        %2502 = vmatpush1.bf16.msra.mxu0 %v2342
        %2503 = vmatprep.subr.bf16.mxu0 0
        %2504 = vmatpush1.bf16.msra.mxu0 %v2341
        %2505 = vmatprep.subr.bf16.mxu0 0
        %2506 = vmatpush1.bf16.msra.mxu0 %v2340
        %2507 = vmatprep.subr.bf16.mxu0 0
        %2508 = vmatpush1.bf16.msra.mxu0 %v2339
        %2509 = vmatprep.subr.bf16.mxu0 0
        %2510 = vmatpush1.bf16.msra.mxu0 %v2338
        %2511 = vmatprep.subr.bf16.mxu0 0
        %2512 = vmatpush1.bf16.msra.mxu0 %v2337
        %2513 = vmatprep.subr.bf16.mxu0 0
        %2514 = vmatpush2.bf16.msra.mxu0 %v2352
        %2515 = vmatprep.subr.bf16.mxu0 0
        %2516 = vmatpush2.bf16.msra.mxu0 %v2351
        %2517 = vmatprep.subr.bf16.mxu0 0
        %2518 = vmatpush2.bf16.msra.mxu0 %v2350
        %2519 = vmatprep.subr.bf16.mxu0 0
        %2520 = vmatpush2.bf16.msra.mxu0 %v2349
        %2521 = vmatprep.subr.bf16.mxu0 0
        %2522 = vmatpush2.bf16.msra.mxu0 %v2348
        %2523 = vmatprep.subr.bf16.mxu0 0
        %2524 = vmatpush2.bf16.msra.mxu0 %v2347
        %2525 = vmatprep.subr.bf16.mxu0 0
        %2526 = vmatpush2.bf16.msra.mxu0 %v2346
        %2527 = vmatprep.subr.bf16.mxu0 0
        %2528 = vmatpush2.bf16.msra.mxu0 %v2345
        %2529 = vmatprep.mubr.bf16.mxu0 %v1967
        %2530 = vmatmul.mubr.bf16.gmra.mxu0 %v1966
        %v2531 = vpop.f32.mrf.mxu0
        %v2532 = vadd.f32 %v2492, %v2531
        %v2533 = vpop.f32.mrf.mxu0
        %v2534 = vpop.f32.mrf.mxu0
        %v2535 = vpop.f32.mrf.mxu0
        %2536 = vdwg.mxu0
        %2537 = vmatprep.subr.bf16.mxu0 0
        %2538 = vmatpush1.bf16.msra.mxu0 %v2360
        %2539 = vmatprep.subr.bf16.mxu0 0
        %2540 = vmatpush1.bf16.msra.mxu0 %v2359
        %2541 = vmatprep.subr.bf16.mxu0 0
        %2542 = vmatpush1.bf16.msra.mxu0 %v2358
        %2543 = vmatprep.subr.bf16.mxu0 0
        %2544 = vmatpush1.bf16.msra.mxu0 %v2357
        %2545 = vmatprep.subr.bf16.mxu0 0
        %2546 = vmatpush1.bf16.msra.mxu0 %v2356
        %2547 = vmatprep.subr.bf16.mxu0 0
        %2548 = vmatpush1.bf16.msra.mxu0 %v2355
        %2549 = vmatprep.subr.bf16.mxu0 0
        %2550 = vmatpush1.bf16.msra.mxu0 %v2354
        %2551 = vmatprep.subr.bf16.mxu0 0
        %2552 = vmatpush1.bf16.msra.mxu0 %v2353
        %2553 = vmatprep.subr.bf16.mxu0 0
        %2554 = vmatpush2.bf16.msra.mxu0 0
        %2555 = vmatprep.subr.bf16.mxu0 0
        %2556 = vmatpush2.bf16.msra.mxu0 0
        %2557 = vmatprep.subr.bf16.mxu0 0
        %2558 = vmatpush2.bf16.msra.mxu0 0
        %2559 = vmatprep.subr.bf16.mxu0 0
        %2560 = vmatpush2.bf16.msra.mxu0 0
        %2561 = vmatprep.subr.bf16.mxu0 0
        %2562 = vmatpush2.bf16.msra.mxu0 0
        %2563 = vmatprep.subr.bf16.mxu0 0
        %2564 = vmatpush2.bf16.msra.mxu0 0
        %2565 = vmatprep.subr.bf16.mxu0 0
        %2566 = vmatpush2.bf16.msra.mxu0 0
        %2567 = vmatprep.subr.bf16.mxu0 0
        %2568 = vmatpush2.bf16.msra.mxu0 0
        %2569 = vmatprep.mubr.bf16.mxu0 0
        %2570 = vmatmul.mubr.bf16.gmra.mxu0 %v1968
        %v2571 = vpop.f32.mrf.mxu0
        %v2572 = vadd.f32 %v2532, %v2571
        %v2573 = vpop.f32.mrf.mxu0
        %v2574 = vpop.f32.mrf.mxu0
        %v2575 = vpop.f32.mrf.mxu0
        %2576 = vdwg.mxu0
        %v2577 = vadd.f32 %v1961, %v2572
        %2578 = vst [vmem:[%s326] sm:$0xff] %v2577
        %p2579 = scmp.lt.s32.totalorder %s22, 0
        %s2580 = scalar_select %p2579, %s22, 0
        %s2581 = smul.addr %s2580, 8
        %s2582 = scalar_lea.vmem %s5, %s2581
        // Predicated region
        $region61: #{mnist_hidden_net2_forward.1} parent=39 // pred_check
          %p2583 = pneg %p165
        $region62: #{mnist_hidden_net2_forward.1} parent=39 // pred_check_branch
          %2585 = sbr.rel (%p2583) target = $region64
        $region63: #{mnist_hidden_net2_forward.1} parent=39 // pred_region
          _
        $region64: #{mnist_hidden_net2_forward.1} parent=39 // pred_fallthru
          _
        // Predicated region
        $region65: #{mnist_hidden_net2_forward.1} parent=39 // pred_check
          %p2586 = pneg %p165
        $region66: #{mnist_hidden_net2_forward.1} parent=39 // pred_check_branch
          %2588 = sbr.rel (%p2586) target = $region68
        $region67: #{mnist_hidden_net2_forward.1} parent=39 // pred_region
          %p2589 = scmp.lt.s32.totalorder %s22, 0
          %s2590 = scalar_select %p2589, %s22, 0
          %s2591 = smul.addr %s2590, 8
          %s2592 = scalar_lea.vmem %s5, %s2591
        $region68: #{mnist_hidden_net2_forward.1} parent=39 // pred_fallthru
          _
      $region40: #{mnist_hidden_net2_forward.1} parent=5 // pred_fallthru
        _
      %p2593 = scmp.le.s32.totalorder 2, %s13
      // Predicated region
      $region69: #{mnist_hidden_net2_forward.1} parent=5 // pred_check
        %p2594 = pneg %p2593
      $region70: #{mnist_hidden_net2_forward.1} parent=5 // pred_check_branch
        %2596 = sbr.rel (%p2594) target = $region72
      $region71: #{mnist_hidden_net2_forward.1} parent=5 // pred_region
        %s2597 = ssub.s32 %s13, 2
      $region72: #{mnist_hidden_net2_forward.1} parent=5 // pred_fallthru
        _
    $region6: #{mnist_hidden_net2_forward.1} parent=1 // loop_footer
      %s17 = sadd.s32 1, %s13
    $region7: #{mnist_hidden_net2_forward.1} parent=1 // loop_footer_branch
      %12 = sbr.rel target = $region3
    $region8: #{mnist_hidden_net2_forward.1} parent=1 // loop_exit
      _
    %2598 = vsyncpa [#allocation3], 1
    %s2599 = scalar_lea.sflag [#allocation3], 1
    %2600 = vsyncpa %s2599, 1
    %2601 = vsyncpa [#allocation5], 1

</llo_original>
